<compile_context>
chip_gen: v7x
topology: tpu7x:2x2x1
jax: 0.10.0
libtpu: 0.0.40
codegen_flags: <defaults>
</compile_context>

<pallas_src>
import functools

import jax
import jax.numpy as jnp
from jax.experimental import pallas as pl
from jax.experimental.pallas import tpu as pltpu


def _mlp_m_part2_kernel(x_ref, b_ref, w6_ref, w7_ref, w8_ref, w9_ref, o_ref,
                        *, n_hidden, out_features):
    """Fused fc6+ReLU (+eval dropout) -> fc7+ReLU -> fc8+ReLU -> fc9."""
    h = x_ref[...].astype(jnp.bfloat16)                       # (tm, d_in)

    # fc6 + ReLU  (dropout(p=0.2) is identity in eval/inference mode)
    h = jnp.dot(h, w6_ref[...], preferred_element_type=jnp.float32)
    h = jnp.maximum(h + b_ref[0:1, :n_hidden], 0.0)
    # TODO(synk): training-mode dropout would need pltpu.prng_seed /
    # pltpu.stateful_bernoulli masking; eval-mode (identity) is implemented.

    # fc7 + ReLU
    h = jnp.dot(h.astype(jnp.bfloat16), w7_ref[...],
                preferred_element_type=jnp.float32)
    h = jnp.maximum(h + b_ref[1:2, :n_hidden], 0.0)

    # fc8 + ReLU
    h = jnp.dot(h.astype(jnp.bfloat16), w8_ref[...],
                preferred_element_type=jnp.float32)
    h = jnp.maximum(h + b_ref[2:3, :n_hidden], 0.0)

    # fc9 (no activation)
    out = jnp.dot(h.astype(jnp.bfloat16), w9_ref[...],
                  preferred_element_type=jnp.float32)
    out = out + b_ref[3:4, :out_features]

    o_ref[...] = out.astype(o_ref.dtype)


def mlp_m_part2(x, params, *, block_m=None):
    """params: 4 (W, b) pairs; W is (in, out) (i.e. torch weight.T), b is (out,)."""
    B, d_in = x.shape
    (w6, b6), (w7, b7), (w8, b8), (w9, b9) = params
    n_hidden = w6.shape[1]
    d_out = w9.shape[1]

    # bf16 MXU operands (halves weight DMA bytes, accumulation stays f32).
    w6, w7, w8, w9 = (w.astype(jnp.bfloat16) for w in (w6, w7, w8, w9))

    # Pack all four biases into a single (4, max_width) f32 block.
    max_w = max(n_hidden, d_out)
    b_packed = jnp.zeros((4, max_w), jnp.float32)
    for i, b in enumerate((b6, b7, b8, b9)):
        b_packed = b_packed.at[i, : b.shape[0]].set(b.astype(jnp.float32))

    # Tile the batch so each dot sees M >= 128/256 and the grid can be sharded
    # across TensorCores.
    if block_m is None:
        block_m = B
        for cand in (512, 256, 128):
            if B % cand == 0:
                block_m = cand
                break
    grid = (B // block_m,)

    const = lambda i: (0, 0)          # weights/biases resident across grid steps

    kernel = functools.partial(_mlp_m_part2_kernel,
                               n_hidden=n_hidden, out_features=d_out)

    out_dtype = x.dtype
    # Alias x -> output when shapes/dtypes match (in_features == out_features).
    io_alias = {0: 0} if (d_in == d_out and x.dtype == out_dtype) else {}

    return pl.pallas_call(
        kernel,
        out_shape=jax.ShapeDtypeStruct((B, d_out), out_dtype),
        grid_spec=pltpu.PrefetchScalarGridSpec(
            num_scalar_prefetch=0,
            grid=grid,
            in_specs=[
                pl.BlockSpec((block_m, d_in), lambda i: (i, 0)),   # x (batch-tiled)
                pl.BlockSpec((4, max_w), const),                   # packed biases
                pl.BlockSpec((d_in, n_hidden), const),             # fc6 W
                pl.BlockSpec((n_hidden, n_hidden), const),         # fc7 W
                pl.BlockSpec((n_hidden, n_hidden), const),         # fc8 W
                pl.BlockSpec((n_hidden, d_out), const),            # fc9 W
            ],
            out_specs=pl.BlockSpec((block_m, d_out), lambda i: (i, 0)),
        ),
        compiler_params=pltpu.CompilerParams(
            dimension_semantics=("parallel",),
            vmem_limit_bytes=32 * 1024 * 1024,
        ),
        input_output_aliases=io_alias,
    )(x, b_packed, w6, w7, w8, w9)


def init_params(key, d_in, n_hidden, d_out):
    """Mimic MLP_M_part_2.init_weights(): weights constant 1; biases use
    PyTorch's default nn.Linear U(-1/sqrt(fan_in), 1/sqrt(fan_in))."""
    dims = [(d_in, n_hidden), (n_hidden, n_hidden),
            (n_hidden, n_hidden), (n_hidden, d_out)]
    params = []
    for fan_in, fan_out in dims:
        key, kb = jax.random.split(key)
        w = jnp.ones((fan_in, fan_out), jnp.float32)     # (in, out) layout
        bound = 1.0 / (fan_in ** 0.5)
        b = jax.random.uniform(kb, (fan_out,), jnp.float32,
                               minval=-bound, maxval=bound)
        params.append((w, b))
    return params


def reference(x, params):
    """Pure-JAX reference with the same dtype strategy as the kernel
    (bf16 matmul operands, f32 accumulate, f32 elementwise)."""
    def lin(h, w, b):
        return jnp.dot(h.astype(jnp.bfloat16), w.astype(jnp.bfloat16),
                       preferred_element_type=jnp.float32) + b
    (w6, b6), (w7, b7), (w8, b8), (w9, b9) = params
    h = jnp.maximum(lin(x, w6, b6), 0.0)     # fc6 + ReLU (+ eval dropout)
    h = jnp.maximum(lin(h, w7, b7), 0.0)     # fc7 + ReLU
    h = jnp.maximum(lin(h, w8, b8), 0.0)     # fc8 + ReLU
    return lin(h, w9, b9)                    # fc9


if __name__ == "__main__":
    # config: n_features=16, n_nodes=8 -> in/out features = 128; n_hidden = 128.
    config = dict(n_features=16, n_nodes=8, n_hidden=128)
    d_in = d_out = config["n_features"] * config["n_nodes"]
    n_hidden = config["n_hidden"]
    batch = 512   # >=256 rows per tile so every matmul fills the MXU

    key = jax.random.PRNGKey(0)
    key, kx = jax.random.split(key)
    x = jax.random.normal(kx, (batch, d_in), jnp.float32)
    params = init_params(key, d_in, n_hidden, d_out)

    ref = reference(x, params)               # computed before x may be aliased

    out = mlp_m_part2(x, params)
    out = jax.block_until_ready(out)

    assert out.shape == (batch, d_out)
    assert out.dtype == jnp.float32
    rel_err = float(jnp.max(jnp.abs(out - ref) / (jnp.abs(ref) + 1.0)))
    assert rel_err < 1e-2, f"mismatch vs reference, rel_err={rel_err}"

    print("KERNEL_OK")
</pallas_src>

<mosaic_0001>
module attributes {stable_mosaic.version = 11 : i64} {
  func.func @_mlp_m_part2_kernel(%arg0: i32, %arg1: memref<512x128xf32, #tpu.memory_space<vmem>>, %arg2: memref<4x128xf32, #tpu.memory_space<vmem>>, %arg3: memref<128x128xbf16, #tpu.memory_space<vmem>>, %arg4: memref<128x128xbf16, #tpu.memory_space<vmem>>, %arg5: memref<128x128xbf16, #tpu.memory_space<vmem>>, %arg6: memref<128x128xbf16, #tpu.memory_space<vmem>>, %arg7: memref<512x128xf32, #tpu.memory_space<vmem>>) attributes {dimension_semantics = [#tpu.dimension_semantics<parallel>], iteration_bounds = array<i64: 1>, scalar_prefetch = 0 : i64, scratch_operands = 0 : i64, tpu.core_type = #tpu.core_type<tc>, window_params = [{transform_indices = @transform_0, window_bounds = array<i64: 512, 128>}, {pipeline_mode = #tpu.pipeline_mode<synchronous>, transform_indices = @transform_1, window_bounds = array<i64: 4, 128>}, {pipeline_mode = #tpu.pipeline_mode<synchronous>, transform_indices = @transform_2, window_bounds = array<i64: 128, 128>}, {pipeline_mode = #tpu.pipeline_mode<synchronous>, transform_indices = @transform_3, window_bounds = array<i64: 128, 128>}, {pipeline_mode = #tpu.pipeline_mode<synchronous>, transform_indices = @transform_4, window_bounds = array<i64: 128, 128>}, {pipeline_mode = #tpu.pipeline_mode<synchronous>, transform_indices = @transform_5, window_bounds = array<i64: 128, 128>}, {transform_indices = @transform_6, window_bounds = array<i64: 512, 128>}]} {
    %c0 = arith.constant 0 : index
    %c0_0 = arith.constant 0 : index
    %0 = vector.load %arg1[%c0, %c0_0] : memref<512x128xf32, #tpu.memory_space<vmem>>, vector<512x128xf32>
    %1 = arith.truncf %0 : vector<512x128xf32> to vector<512x128xbf16>
    %c0_1 = arith.constant 0 : index
    %c0_2 = arith.constant 0 : index
    %2 = vector.load %arg3[%c0_1, %c0_2] : memref<128x128xbf16, #tpu.memory_space<vmem>>, vector<128x128xbf16>
    %cst = arith.constant dense<0.000000e+00> : vector<512x128xf32>
    %3 = tpu.matmul %1, %2, %cst {dimension_numbers = #tpu.dot_dimension_numbers<[1], [0], [0], [1], [0, 0, 1, 1], [], []>} : vector<512x128xbf16>, vector<128x128xbf16>, vector<512x128xf32> -> vector<512x128xf32>
    %c0_3 = arith.constant 0 : index
    %c0_4 = arith.constant 0 : index
    %4 = vector.load %arg2[%c0_3, %c0_4] : memref<4x128xf32, #tpu.memory_space<vmem>>, vector<1x128xf32>
    %5 = vector.broadcast %4 : vector<1x128xf32> to vector<512x128xf32>
    %6 = arith.addf %3, %5 : vector<512x128xf32>
    %cst_5 = arith.constant 0.000000e+00 : f32
    %7 = vector.broadcast %cst_5 : f32 to vector<512x128xf32>
    %8 = arith.maximumf %6, %7 : vector<512x128xf32>
    %9 = arith.truncf %8 : vector<512x128xf32> to vector<512x128xbf16>
    %c0_6 = arith.constant 0 : index
    %c0_7 = arith.constant 0 : index
    %10 = vector.load %arg4[%c0_6, %c0_7] : memref<128x128xbf16, #tpu.memory_space<vmem>>, vector<128x128xbf16>
    %cst_8 = arith.constant dense<0.000000e+00> : vector<512x128xf32>
    %11 = tpu.matmul %9, %10, %cst_8 {dimension_numbers = #tpu.dot_dimension_numbers<[1], [0], [0], [1], [0, 0, 1, 1], [], []>} : vector<512x128xbf16>, vector<128x128xbf16>, vector<512x128xf32> -> vector<512x128xf32>
    %c1 = arith.constant 1 : index
    %c0_9 = arith.constant 0 : index
    %12 = vector.load %arg2[%c1, %c0_9] : memref<4x128xf32, #tpu.memory_space<vmem>>, vector<1x128xf32>
    %13 = vector.broadcast %12 : vector<1x128xf32> to vector<512x128xf32>
    %14 = arith.addf %11, %13 : vector<512x128xf32>
    %cst_10 = arith.constant 0.000000e+00 : f32
    %15 = vector.broadcast %cst_10 : f32 to vector<512x128xf32>
    %16 = arith.maximumf %14, %15 : vector<512x128xf32>
    %17 = arith.truncf %16 : vector<512x128xf32> to vector<512x128xbf16>
    %c0_11 = arith.constant 0 : index
    %c0_12 = arith.constant 0 : index
    %18 = vector.load %arg5[%c0_11, %c0_12] : memref<128x128xbf16, #tpu.memory_space<vmem>>, vector<128x128xbf16>
    %cst_13 = arith.constant dense<0.000000e+00> : vector<512x128xf32>
    %19 = tpu.matmul %17, %18, %cst_13 {dimension_numbers = #tpu.dot_dimension_numbers<[1], [0], [0], [1], [0, 0, 1, 1], [], []>} : vector<512x128xbf16>, vector<128x128xbf16>, vector<512x128xf32> -> vector<512x128xf32>
    %c2 = arith.constant 2 : index
    %c0_14 = arith.constant 0 : index
    %20 = vector.load %arg2[%c2, %c0_14] : memref<4x128xf32, #tpu.memory_space<vmem>>, vector<1x128xf32>
    %21 = vector.broadcast %20 : vector<1x128xf32> to vector<512x128xf32>
    %22 = arith.addf %19, %21 : vector<512x128xf32>
    %cst_15 = arith.constant 0.000000e+00 : f32
    %23 = vector.broadcast %cst_15 : f32 to vector<512x128xf32>
    %24 = arith.maximumf %22, %23 : vector<512x128xf32>
    %25 = arith.truncf %24 : vector<512x128xf32> to vector<512x128xbf16>
    %c0_16 = arith.constant 0 : index
    %c0_17 = arith.constant 0 : index
    %26 = vector.load %arg6[%c0_16, %c0_17] : memref<128x128xbf16, #tpu.memory_space<vmem>>, vector<128x128xbf16>
    %cst_18 = arith.constant dense<0.000000e+00> : vector<512x128xf32>
    %27 = tpu.matmul %25, %26, %cst_18 {dimension_numbers = #tpu.dot_dimension_numbers<[1], [0], [0], [1], [0, 0, 1, 1], [], []>} : vector<512x128xbf16>, vector<128x128xbf16>, vector<512x128xf32> -> vector<512x128xf32>
    %c3 = arith.constant 3 : index
    %c0_19 = arith.constant 0 : index
    %28 = vector.load %arg2[%c3, %c0_19] : memref<4x128xf32, #tpu.memory_space<vmem>>, vector<1x128xf32>
    %29 = vector.broadcast %28 : vector<1x128xf32> to vector<512x128xf32>
    %30 = arith.addf %27, %29 : vector<512x128xf32>
    %c0_20 = arith.constant 0 : index
    %c0_21 = arith.constant 0 : index
    %31 = vector.load %arg7[%c0_20, %c0_21] : memref<512x128xf32, #tpu.memory_space<vmem>>, vector<512x128xf32>
    tpu.vector_store %arg7[%c0_20, %c0_21], %30 {strides = array<i32>} : memref<512x128xf32, #tpu.memory_space<vmem>>, vector<512x128xf32>,
    return
  }
  func.func @transform_0(%arg0: i32) -> (i32, i32) {
    %c0_i32 = arith.constant 0 : i32
    %c0_i32_0 = arith.constant 0 : i32
    return %arg0, %c0_i32 : i32, i32
  }
  func.func @transform_1(%arg0: i32) -> (i32, i32) {
    %c0_i32 = arith.constant 0 : i32
    %c0_i32_0 = arith.constant 0 : i32
    %c0_i32_1 = arith.constant 0 : i32
    return %c0_i32, %c0_i32_0 : i32, i32
  }
  func.func @transform_2(%arg0: i32) -> (i32, i32) {
    %c0_i32 = arith.constant 0 : i32
    %c0_i32_0 = arith.constant 0 : i32
    %c0_i32_1 = arith.constant 0 : i32
    return %c0_i32, %c0_i32_0 : i32, i32
  }
  func.func @transform_3(%arg0: i32) -> (i32, i32) {
    %c0_i32 = arith.constant 0 : i32
    %c0_i32_0 = arith.constant 0 : i32
    %c0_i32_1 = arith.constant 0 : i32
    return %c0_i32, %c0_i32_0 : i32, i32
  }
  func.func @transform_4(%arg0: i32) -> (i32, i32) {
    %c0_i32 = arith.constant 0 : i32
    %c0_i32_0 = arith.constant 0 : i32
    %c0_i32_1 = arith.constant 0 : i32
    return %c0_i32, %c0_i32_0 : i32, i32
  }
  func.func @transform_5(%arg0: i32) -> (i32, i32) {
    %c0_i32 = arith.constant 0 : i32
    %c0_i32_0 = arith.constant 0 : i32
    %c0_i32_1 = arith.constant 0 : i32
    return %c0_i32, %c0_i32_0 : i32, i32
  }
  func.func @transform_6(%arg0: i32) -> (i32, i32) {
    %c0_i32 = arith.constant 0 : i32
    %c0_i32_0 = arith.constant 0 : i32
    return %arg0, %c0_i32 : i32, i32
  }
}

</mosaic_0001>

<llo_original>
// kernel: tpu_custom_call.1
$region0: #{tpu_custom_call.1}
  #allocation0 [shape = 'u32[]', space=smem, size = 0x4, offset = 0x4, fixed_abs, tag = 'smem constant byte address 0x4 - core index']
  #allocation1 [shape = 'u32[144,128]{1,0:T(1,128)}', space=vmem, size = 0x12000, scoped, tag = 'internal scratch']
  %s0 = inlined_call_operand.hbm [shape: f32[512,128], index: 0, kind: input, shape index: {}, may-alias: {0,6}]
  %s1 = inlined_call_operand.vmem [shape: f32[4,128], index: 1, kind: input, shape index: {}]
  %s2 = inlined_call_operand.vmem [shape: bf16[128,128], index: 2, kind: input, shape index: {}]
  %s3 = inlined_call_operand.vmem [shape: bf16[128,128], index: 3, kind: input, shape index: {}]
  %s4 = inlined_call_operand.vmem [shape: bf16[128,128], index: 4, kind: input, shape index: {}]
  %s5 = inlined_call_operand.vmem [shape: bf16[128,128], index: 5, kind: input, shape index: {}]
  %s6 = inlined_call_operand.hbm [shape: f32[512,128], index: 6, kind: output, shape index: {}, may-alias: {0,6}]
  %s7 = sld [smem:[#allocation0]]
  $region38: #{tpu_custom_call.1} parent=0
    _
  %s9 = ssub.s32 1, %s7
  %s10 = scalar_select 0, %s9, %s7
  $region1: #{tpu_custom_call.1} parent=0
    #allocation2 [shape = 'u8[262144]{0}', space=vmem, size = 0x40000, scoped, tag = 'input window, operand 0, single buffered']
    #allocation3 [shape = 's32[1]{0}', space=sflag, size = 0x4, scoped, tag = 'scoped memory for tpu_custom_call.1']
    #allocation4 [shape = 's32[1]{0}', space=sflag, size = 0x4, scoped, tag = 'scoped memory for tpu_custom_call.1']
    #allocation5 [shape = 'u8[262144]{0}', space=vmem, size = 0x40000, scoped, tag = 'output window, operand 0, single buffered']
    %11 = vsyncpa [#allocation3], 0
    %12 = vsyncpa [#allocation4], 0
    // Predicated region
    $region2: #{tpu_custom_call.1} parent=1 // pred_check
      _
    $region3: #{tpu_custom_call.1} parent=1 // pred_check_branch
      %14 = sbr.rel (0) target = $region5
    $region4: #{tpu_custom_call.1} parent=1 // pred_region
      %s16 = ssub.s32 8192, 8192
      %17 = vsyncadd [#allocation3], %s16
      %s18 = sshll.u32 [#allocation2], 4
      %s19 = int_to_ptr.vmem [resolvable:$true] %s18
      %24 = dma.hbm_to_vmem [thread:$0]  %s0, 8192, %s19, [#allocation3], 128, 128, 8
    $region5: #{tpu_custom_call.1} parent=1 // pred_fallthru
      _
    // Predicated region
    $region6: #{tpu_custom_call.1} parent=1 // pred_check
      _
    $region7: #{tpu_custom_call.1} parent=1 // pred_check_branch
      %26 = sbr.rel (0) target = $region9
    $region8: #{tpu_custom_call.1} parent=1 // pred_region
      _
    $region9: #{tpu_custom_call.1} parent=1 // pred_fallthru
      _
    // Predicated region
    $region10: #{tpu_custom_call.1} parent=1 // pred_check
      _
    $region11: #{tpu_custom_call.1} parent=1 // pred_check_branch
      %28 = sbr.rel (0) target = $region13
    $region12: #{tpu_custom_call.1} parent=1 // pred_region
      _
    $region13: #{tpu_custom_call.1} parent=1 // pred_fallthru
      _
    // Predicated region
    $region14: #{tpu_custom_call.1} parent=1 // pred_check
      _
    $region15: #{tpu_custom_call.1} parent=1 // pred_check_branch
      %30 = sbr.rel (0) target = $region17
    $region16: #{tpu_custom_call.1} parent=1 // pred_region
      _
    $region17: #{tpu_custom_call.1} parent=1 // pred_fallthru
      _
    // Predicated region
    $region18: #{tpu_custom_call.1} parent=1 // pred_check
      _
    $region19: #{tpu_custom_call.1} parent=1 // pred_check_branch
      %32 = sbr.rel (0) target = $region21
    $region20: #{tpu_custom_call.1} parent=1 // pred_region
      _
    $region21: #{tpu_custom_call.1} parent=1 // pred_fallthru
      _
    // Predicated region
    $region22: #{tpu_custom_call.1} parent=1 // pred_check
      _
    $region23: #{tpu_custom_call.1} parent=1 // pred_check_branch
      %34 = sbr.rel (0) target = $region25
    $region24: #{tpu_custom_call.1} parent=1 // pred_region
      _
    $region25: #{tpu_custom_call.1} parent=1 // pred_fallthru
      _
    // Predicated region
    $region26: #{tpu_custom_call.1} parent=1 // pred_check
      _
    $region27: #{tpu_custom_call.1} parent=1 // pred_check_branch
      %36 = sbr.rel (0) target = $region29
    $region28: #{tpu_custom_call.1} parent=1 // pred_region
      %37 = dma.done [#allocation3], 8192
    $region29: #{tpu_custom_call.1} parent=1 // pred_fallthru
      _
    %v39 = vld [vmem:[#allocation2] sm:$0xff]
    %v40 = vld [vmem:[#allocation2 + $0x8] sm:$0xff]
    %v41 = vld [vmem:[#allocation2 + $0x10] sm:$0xff]
    %v42 = vld [vmem:[#allocation2 + $0x18] sm:$0xff]
    %v43 = vld [vmem:[#allocation2 + $0x20] sm:$0xff]
    %v44 = vld [vmem:[#allocation2 + $0x28] sm:$0xff]
    %v45 = vld [vmem:[#allocation2 + $0x30] sm:$0xff]
    %v46 = vld [vmem:[#allocation2 + $0x38] sm:$0xff]
    %v47 = vld [vmem:[#allocation2 + $0x40] sm:$0xff]
    %v48 = vld [vmem:[#allocation2 + $0x48] sm:$0xff]
    %v49 = vld [vmem:[#allocation2 + $0x50] sm:$0xff]
    %v50 = vld [vmem:[#allocation2 + $0x58] sm:$0xff]
    %v51 = vld [vmem:[#allocation2 + $0x60] sm:$0xff]
    %v52 = vld [vmem:[#allocation2 + $0x68] sm:$0xff]
    %v53 = vld [vmem:[#allocation2 + $0x70] sm:$0xff]
    %v54 = vld [vmem:[#allocation2 + $0x78] sm:$0xff]
    %v55 = vld [vmem:[#allocation2 + $0x80] sm:$0xff]
    %v56 = vld [vmem:[#allocation2 + $0x88] sm:$0xff]
    %v57 = vld [vmem:[#allocation2 + $0x90] sm:$0xff]
    %v58 = vld [vmem:[#allocation2 + $0x98] sm:$0xff]
    %v59 = vld [vmem:[#allocation2 + $0xa0] sm:$0xff]
    %v60 = vld [vmem:[#allocation2 + $0xa8] sm:$0xff]
    %v61 = vld [vmem:[#allocation2 + $0xb0] sm:$0xff]
    %v62 = vld [vmem:[#allocation2 + $0xb8] sm:$0xff]
    %v63 = vld [vmem:[#allocation2 + $0xc0] sm:$0xff]
    %v64 = vld [vmem:[#allocation2 + $0xc8] sm:$0xff]
    %v65 = vld [vmem:[#allocation2 + $0xd0] sm:$0xff]
    %v66 = vld [vmem:[#allocation2 + $0xd8] sm:$0xff]
    %v67 = vld [vmem:[#allocation2 + $0xe0] sm:$0xff]
    %v68 = vld [vmem:[#allocation2 + $0xe8] sm:$0xff]
    %v69 = vld [vmem:[#allocation2 + $0xf0] sm:$0xff]
    %v70 = vld [vmem:[#allocation2 + $0xf8] sm:$0xff]
    %v71 = vld [vmem:[#allocation2 + $0x100] sm:$0xff]
    %v72 = vld [vmem:[#allocation2 + $0x108] sm:$0xff]
    %v73 = vld [vmem:[#allocation2 + $0x110] sm:$0xff]
    %v74 = vld [vmem:[#allocation2 + $0x118] sm:$0xff]
    %v75 = vld [vmem:[#allocation2 + $0x120] sm:$0xff]
    %v76 = vld [vmem:[#allocation2 + $0x128] sm:$0xff]
    %v77 = vld [vmem:[#allocation2 + $0x130] sm:$0xff]
    %v78 = vld [vmem:[#allocation2 + $0x138] sm:$0xff]
    %v79 = vld [vmem:[#allocation2 + $0x140] sm:$0xff]
    %v80 = vld [vmem:[#allocation2 + $0x148] sm:$0xff]
    %v81 = vld [vmem:[#allocation2 + $0x150] sm:$0xff]
    %v82 = vld [vmem:[#allocation2 + $0x158] sm:$0xff]
    %v83 = vld [vmem:[#allocation2 + $0x160] sm:$0xff]
    %v84 = vld [vmem:[#allocation2 + $0x168] sm:$0xff]
    %v85 = vld [vmem:[#allocation2 + $0x170] sm:$0xff]
    %v86 = vld [vmem:[#allocation2 + $0x178] sm:$0xff]
    %v87 = vld [vmem:[#allocation2 + $0x180] sm:$0xff]
    %v88 = vld [vmem:[#allocation2 + $0x188] sm:$0xff]
    %v89 = vld [vmem:[#allocation2 + $0x190] sm:$0xff]
    %v90 = vld [vmem:[#allocation2 + $0x198] sm:$0xff]
    %v91 = vld [vmem:[#allocation2 + $0x1a0] sm:$0xff]
    %v92 = vld [vmem:[#allocation2 + $0x1a8] sm:$0xff]
    %v93 = vld [vmem:[#allocation2 + $0x1b0] sm:$0xff]
    %v94 = vld [vmem:[#allocation2 + $0x1b8] sm:$0xff]
    %v95 = vld [vmem:[#allocation2 + $0x1c0] sm:$0xff]
    %v96 = vld [vmem:[#allocation2 + $0x1c8] sm:$0xff]
    %v97 = vld [vmem:[#allocation2 + $0x1d0] sm:$0xff]
    %v98 = vld [vmem:[#allocation2 + $0x1d8] sm:$0xff]
    %v99 = vld [vmem:[#allocation2 + $0x1e0] sm:$0xff]
    %v100 = vld [vmem:[#allocation2 + $0x1e8] sm:$0xff]
    %v101 = vld [vmem:[#allocation2 + $0x1f0] sm:$0xff]
    %v102 = vld [vmem:[#allocation2 + $0x1f8] sm:$0xff]
    %v103 = vpack.c.bf16 %v40, %v39
    %v104 = vpack.c.bf16 %v42, %v41
    %v105 = vpack.c.bf16 %v44, %v43
    %v106 = vpack.c.bf16 %v46, %v45
    %v107 = vpack.c.bf16 %v48, %v47
    %v108 = vpack.c.bf16 %v50, %v49
    %v109 = vpack.c.bf16 %v52, %v51
    %v110 = vpack.c.bf16 %v54, %v53
    %v111 = vpack.c.bf16 %v56, %v55
    %v112 = vpack.c.bf16 %v58, %v57
    %v113 = vpack.c.bf16 %v60, %v59
    %v114 = vpack.c.bf16 %v62, %v61
    %v115 = vpack.c.bf16 %v64, %v63
    %v116 = vpack.c.bf16 %v66, %v65
    %v117 = vpack.c.bf16 %v68, %v67
    %v118 = vpack.c.bf16 %v70, %v69
    %v119 = vpack.c.bf16 %v72, %v71
    %v120 = vpack.c.bf16 %v74, %v73
    %v121 = vpack.c.bf16 %v76, %v75
    %v122 = vpack.c.bf16 %v78, %v77
    %v123 = vpack.c.bf16 %v80, %v79
    %v124 = vpack.c.bf16 %v82, %v81
    %v125 = vpack.c.bf16 %v84, %v83
    %v126 = vpack.c.bf16 %v86, %v85
    %v127 = vpack.c.bf16 %v88, %v87
    %v128 = vpack.c.bf16 %v90, %v89
    %v129 = vpack.c.bf16 %v92, %v91
    %v130 = vpack.c.bf16 %v94, %v93
    %v131 = vpack.c.bf16 %v96, %v95
    %v132 = vpack.c.bf16 %v98, %v97
    %v133 = vpack.c.bf16 %v100, %v99
    %v134 = vpack.c.bf16 %v102, %v101
    %v135 = vld [vmem:[%s2] sm:$0xf]
    %v136 = vld [vmem:[%s2 + $0x4] sm:$0xf]
    %v137 = vld [vmem:[%s2 + $0x8] sm:$0xf]
    %v138 = vld [vmem:[%s2 + $0xc] sm:$0xf]
    %v139 = vld [vmem:[%s2 + $0x10] sm:$0xf]
    %v140 = vld [vmem:[%s2 + $0x14] sm:$0xf]
    %v141 = vld [vmem:[%s2 + $0x18] sm:$0xf]
    %v142 = vld [vmem:[%s2 + $0x1c] sm:$0xf]
    %v143 = vld [vmem:[%s2 + $0x20] sm:$0xf]
    %v144 = vld [vmem:[%s2 + $0x24] sm:$0xf]
    %v145 = vld [vmem:[%s2 + $0x28] sm:$0xf]
    %v146 = vld [vmem:[%s2 + $0x2c] sm:$0xf]
    %v147 = vld [vmem:[%s2 + $0x30] sm:$0xf]
    %v148 = vld [vmem:[%s2 + $0x34] sm:$0xf]
    %v149 = vld [vmem:[%s2 + $0x38] sm:$0xf]
    %v150 = vld [vmem:[%s2 + $0x3c] sm:$0xf]
    %v151 = vld [vmem:[%s1] sm:$0x1]
    %v152 = vlaneseq
    %v153 = vshrl.u32 %v152, 7
    %v154 = vsub.s32 0, %v153
    %v155 = vrot.slane %v151, %v154
    %v172 = vunpack.c.l.b16 %v135
    %v173 = vunpack.c.l.b16 %v136
    %v174 = vunpack.c.l.b16 %v137
    %v175 = vunpack.c.l.b16 %v138
    %v176 = vunpack.c.l.b16 %v139
    %v177 = vunpack.c.l.b16 %v140
    %v178 = vunpack.c.l.b16 %v141
    %v179 = vunpack.c.l.b16 %v142
    %v180 = vunpack.c.l.b16 %v143
    %v181 = vunpack.c.l.b16 %v144
    %v182 = vunpack.c.l.b16 %v145
    %v183 = vunpack.c.l.b16 %v146
    %v184 = vunpack.c.l.b16 %v147
    %v185 = vunpack.c.l.b16 %v148
    %v186 = vunpack.c.l.b16 %v149
    %v187 = vunpack.c.l.b16 %v150
    %v188 = vpack.c.b16 %v173, %v172
    %v189 = vpack.c.b16 %v175, %v174
    %v190 = vpack.c.b16 %v177, %v176
    %v191 = vpack.c.b16 %v179, %v178
    %v192 = vpack.c.b16 %v181, %v180
    %v193 = vpack.c.b16 %v183, %v182
    %v194 = vpack.c.b16 %v185, %v184
    %v195 = vpack.c.b16 %v187, %v186
    %204 = vmatprep.subr.bf16.mxu0 0
    %205 = vmatpush1.bf16.msra.mxu0 %v188
    %206 = vmatprep.subr.bf16.mxu0 0
    %207 = vmatpush1.bf16.msra.mxu0 %v189
    %208 = vmatprep.subr.bf16.mxu0 0
    %209 = vmatpush1.bf16.msra.mxu0 %v190
    %210 = vmatprep.subr.bf16.mxu0 0
    %211 = vmatpush1.bf16.msra.mxu0 %v191
    %212 = vmatprep.subr.bf16.mxu0 0
    %213 = vmatpush1.bf16.msra.mxu0 %v192
    %214 = vmatprep.subr.bf16.mxu0 0
    %215 = vmatpush1.bf16.msra.mxu0 %v193
    %216 = vmatprep.subr.bf16.mxu0 0
    %217 = vmatpush1.bf16.msra.mxu0 %v194
    %218 = vmatprep.subr.bf16.mxu0 0
    %219 = vmatpush1.bf16.msra.mxu0 %v195
    %220 = vmatprep.subr.bf16.mxu0 0
    %221 = vmatpush1.bf16.msra.mxu0 0
    %222 = vmatprep.subr.bf16.mxu0 0
    %223 = vmatpush1.bf16.msra.mxu0 0
    %224 = vmatprep.subr.bf16.mxu0 0
    %225 = vmatpush1.bf16.msra.mxu0 0
    %226 = vmatprep.subr.bf16.mxu0 0
    %227 = vmatpush1.bf16.msra.mxu0 0
    %228 = vmatprep.subr.bf16.mxu0 0
    %229 = vmatpush1.bf16.msra.mxu0 0
    %230 = vmatprep.subr.bf16.mxu0 0
    %231 = vmatpush1.bf16.msra.mxu0 0
    %232 = vmatprep.subr.bf16.mxu0 0
    %233 = vmatpush1.bf16.msra.mxu0 0
    %234 = vmatprep.subr.bf16.mxu0 0
    %235 = vmatpush1.bf16.msra.mxu0 0
    %236 = vmatprep.mubr.bf16.mxu0 0
    %237 = vmatmul.mubr.bf16.gmra.mrb[0].mxu0 %v103
    %v238 = vpop.f32.mrb[0].mxu0
    %v239 = vadd.f32 %v155, %v238
    %v240 = vpop.f32.mrb[0].mxu0
    %v241 = vpop.f32.mrb[0].mxu0
    %v242 = vadd.f32 %v155, %v241
    %v243 = vpop.f32.mrb[0].mxu0
    %244 = vmatprep.mubr.bf16.mxu0 0
    %245 = vmatmul.mubr.bf16.gmra.mrb[0].mxu0 %v104
    %v246 = vpop.f32.mrb[0].mxu0
    %v247 = vadd.f32 %v155, %v246
    %v248 = vpop.f32.mrb[0].mxu0
    %v249 = vpop.f32.mrb[0].mxu0
    %v250 = vadd.f32 %v155, %v249
    %v251 = vpop.f32.mrb[0].mxu0
    %252 = vmatprep.mubr.bf16.mxu0 0
    %253 = vmatmul.mubr.bf16.gmra.mrb[0].mxu0 %v105
    %v254 = vpop.f32.mrb[0].mxu0
    %v255 = vadd.f32 %v155, %v254
    %v256 = vpop.f32.mrb[0].mxu0
    %v257 = vpop.f32.mrb[0].mxu0
    %v258 = vadd.f32 %v155, %v257
    %v259 = vpop.f32.mrb[0].mxu0
    %260 = vmatprep.mubr.bf16.mxu0 0
    %261 = vmatmul.mubr.bf16.gmra.mrb[0].mxu0 %v106
    %v262 = vpop.f32.mrb[0].mxu0
    %v263 = vadd.f32 %v155, %v262
    %v264 = vpop.f32.mrb[0].mxu0
    %v265 = vpop.f32.mrb[0].mxu0
    %v266 = vadd.f32 %v155, %v265
    %v267 = vpop.f32.mrb[0].mxu0
    %268 = vmatprep.mubr.bf16.mxu0 0
    %269 = vmatmul.mubr.bf16.gmra.mrb[0].mxu0 %v107
    %v270 = vpop.f32.mrb[0].mxu0
    %v271 = vadd.f32 %v155, %v270
    %v272 = vpop.f32.mrb[0].mxu0
    %v273 = vpop.f32.mrb[0].mxu0
    %v274 = vadd.f32 %v155, %v273
    %v275 = vpop.f32.mrb[0].mxu0
    %276 = vmatprep.mubr.bf16.mxu0 0
    %277 = vmatmul.mubr.bf16.gmra.mrb[0].mxu0 %v108
    %v278 = vpop.f32.mrb[0].mxu0
    %v279 = vadd.f32 %v155, %v278
    %v280 = vpop.f32.mrb[0].mxu0
    %v281 = vpop.f32.mrb[0].mxu0
    %v282 = vadd.f32 %v155, %v281
    %v283 = vpop.f32.mrb[0].mxu0
    %284 = vmatprep.mubr.bf16.mxu0 0
    %285 = vmatmul.mubr.bf16.gmra.mrb[0].mxu0 %v109
    %v286 = vpop.f32.mrb[0].mxu0
    %v287 = vadd.f32 %v155, %v286
    %v288 = vpop.f32.mrb[0].mxu0
    %v289 = vpop.f32.mrb[0].mxu0
    %v290 = vadd.f32 %v155, %v289
    %v291 = vpop.f32.mrb[0].mxu0
    %292 = vmatprep.mubr.bf16.mxu0 0
    %293 = vmatmul.mubr.bf16.gmra.mrb[0].mxu0 %v110
    %v294 = vpop.f32.mrb[0].mxu0
    %v295 = vadd.f32 %v155, %v294
    %v296 = vpop.f32.mrb[0].mxu0
    %v297 = vpop.f32.mrb[0].mxu0
    %v298 = vadd.f32 %v155, %v297
    %v299 = vpop.f32.mrb[0].mxu0
    %300 = vmatprep.mubr.bf16.mxu0 0
    %301 = vmatmul.mubr.bf16.gmra.mrb[0].mxu0 %v111
    %v302 = vpop.f32.mrb[0].mxu0
    %v303 = vadd.f32 %v155, %v302
    %v304 = vpop.f32.mrb[0].mxu0
    %v305 = vpop.f32.mrb[0].mxu0
    %v306 = vadd.f32 %v155, %v305
    %v307 = vpop.f32.mrb[0].mxu0
    %308 = vmatprep.mubr.bf16.mxu0 0
    %309 = vmatmul.mubr.bf16.gmra.mrb[0].mxu0 %v112
    %v310 = vpop.f32.mrb[0].mxu0
    %v311 = vadd.f32 %v155, %v310
    %v312 = vpop.f32.mrb[0].mxu0
    %v313 = vpop.f32.mrb[0].mxu0
    %v314 = vadd.f32 %v155, %v313
    %v315 = vpop.f32.mrb[0].mxu0
    %316 = vmatprep.mubr.bf16.mxu0 0
    %317 = vmatmul.mubr.bf16.gmra.mrb[0].mxu0 %v113
    %v318 = vpop.f32.mrb[0].mxu0
    %v319 = vadd.f32 %v155, %v318
    %v320 = vpop.f32.mrb[0].mxu0
    %v321 = vpop.f32.mrb[0].mxu0
    %v322 = vadd.f32 %v155, %v321
    %v323 = vpop.f32.mrb[0].mxu0
    %324 = vmatprep.mubr.bf16.mxu0 0
    %325 = vmatmul.mubr.bf16.gmra.mrb[0].mxu0 %v114
    %v326 = vpop.f32.mrb[0].mxu0
    %v327 = vadd.f32 %v155, %v326
    %v328 = vpop.f32.mrb[0].mxu0
    %v329 = vpop.f32.mrb[0].mxu0
    %v330 = vadd.f32 %v155, %v329
    %v331 = vpop.f32.mrb[0].mxu0
    %332 = vmatprep.mubr.bf16.mxu0 0
    %333 = vmatmul.mubr.bf16.gmra.mrb[0].mxu0 %v115
    %v334 = vpop.f32.mrb[0].mxu0
    %v335 = vadd.f32 %v155, %v334
    %v336 = vpop.f32.mrb[0].mxu0
    %v337 = vpop.f32.mrb[0].mxu0
    %v338 = vadd.f32 %v155, %v337
    %v339 = vpop.f32.mrb[0].mxu0
    %340 = vmatprep.mubr.bf16.mxu0 0
    %341 = vmatmul.mubr.bf16.gmra.mrb[0].mxu0 %v116
    %v342 = vpop.f32.mrb[0].mxu0
    %v343 = vadd.f32 %v155, %v342
    %v344 = vpop.f32.mrb[0].mxu0
    %v345 = vpop.f32.mrb[0].mxu0
    %v346 = vadd.f32 %v155, %v345
    %v347 = vpop.f32.mrb[0].mxu0
    %348 = vmatprep.mubr.bf16.mxu0 0
    %349 = vmatmul.mubr.bf16.gmra.mrb[0].mxu0 %v117
    %v350 = vpop.f32.mrb[0].mxu0
    %v351 = vadd.f32 %v155, %v350
    %v352 = vpop.f32.mrb[0].mxu0
    %v353 = vpop.f32.mrb[0].mxu0
    %v354 = vadd.f32 %v155, %v353
    %v355 = vpop.f32.mrb[0].mxu0
    %356 = vmatprep.mubr.bf16.mxu0 0
    %357 = vmatmul.mubr.bf16.gmra.mrb[0].mxu0 %v118
    %v358 = vpop.f32.mrb[0].mxu0
    %v359 = vadd.f32 %v155, %v358
    %v360 = vpop.f32.mrb[0].mxu0
    %v361 = vpop.f32.mrb[0].mxu0
    %v362 = vadd.f32 %v155, %v361
    %v363 = vpop.f32.mrb[0].mxu0
    %364 = vmatprep.mubr.bf16.mxu0 0
    %365 = vmatmul.mubr.bf16.gmra.mrb[0].mxu0 %v119
    %v366 = vpop.f32.mrb[0].mxu0
    %v367 = vadd.f32 %v155, %v366
    %v368 = vpop.f32.mrb[0].mxu0
    %v369 = vpop.f32.mrb[0].mxu0
    %v370 = vadd.f32 %v155, %v369
    %v371 = vpop.f32.mrb[0].mxu0
    %372 = vmatprep.mubr.bf16.mxu0 0
    %373 = vmatmul.mubr.bf16.gmra.mrb[0].mxu0 %v120
    %v374 = vpop.f32.mrb[0].mxu0
    %v375 = vadd.f32 %v155, %v374
    %v376 = vpop.f32.mrb[0].mxu0
    %v377 = vpop.f32.mrb[0].mxu0
    %v378 = vadd.f32 %v155, %v377
    %v379 = vpop.f32.mrb[0].mxu0
    %380 = vmatprep.mubr.bf16.mxu0 0
    %381 = vmatmul.mubr.bf16.gmra.mrb[0].mxu0 %v121
    %v382 = vpop.f32.mrb[0].mxu0
    %v383 = vadd.f32 %v155, %v382
    %v384 = vpop.f32.mrb[0].mxu0
    %v385 = vpop.f32.mrb[0].mxu0
    %v386 = vadd.f32 %v155, %v385
    %v387 = vpop.f32.mrb[0].mxu0
    %388 = vmatprep.mubr.bf16.mxu0 0
    %389 = vmatmul.mubr.bf16.gmra.mrb[0].mxu0 %v122
    %v390 = vpop.f32.mrb[0].mxu0
    %v391 = vadd.f32 %v155, %v390
    %v392 = vpop.f32.mrb[0].mxu0
    %v393 = vpop.f32.mrb[0].mxu0
    %v394 = vadd.f32 %v155, %v393
    %v395 = vpop.f32.mrb[0].mxu0
    %396 = vmatprep.mubr.bf16.mxu0 0
    %397 = vmatmul.mubr.bf16.gmra.mrb[0].mxu0 %v123
    %v398 = vpop.f32.mrb[0].mxu0
    %v399 = vadd.f32 %v155, %v398
    %v400 = vpop.f32.mrb[0].mxu0
    %v401 = vpop.f32.mrb[0].mxu0
    %v402 = vadd.f32 %v155, %v401
    %v403 = vpop.f32.mrb[0].mxu0
    %404 = vmatprep.mubr.bf16.mxu0 0
    %405 = vmatmul.mubr.bf16.gmra.mrb[0].mxu0 %v124
    %v406 = vpop.f32.mrb[0].mxu0
    %v407 = vadd.f32 %v155, %v406
    %v408 = vpop.f32.mrb[0].mxu0
    %v409 = vpop.f32.mrb[0].mxu0
    %v410 = vadd.f32 %v155, %v409
    %v411 = vpop.f32.mrb[0].mxu0
    %412 = vmatprep.mubr.bf16.mxu0 0
    %413 = vmatmul.mubr.bf16.gmra.mrb[0].mxu0 %v125
    %v414 = vpop.f32.mrb[0].mxu0
    %v415 = vadd.f32 %v155, %v414
    %v416 = vpop.f32.mrb[0].mxu0
    %v417 = vpop.f32.mrb[0].mxu0
    %v418 = vadd.f32 %v155, %v417
    %v419 = vpop.f32.mrb[0].mxu0
    %420 = vmatprep.mubr.bf16.mxu0 0
    %421 = vmatmul.mubr.bf16.gmra.mrb[0].mxu0 %v126
    %v422 = vpop.f32.mrb[0].mxu0
    %v423 = vadd.f32 %v155, %v422
    %v424 = vpop.f32.mrb[0].mxu0
    %v425 = vpop.f32.mrb[0].mxu0
    %v426 = vadd.f32 %v155, %v425
    %v427 = vpop.f32.mrb[0].mxu0
    %428 = vmatprep.mubr.bf16.mxu0 0
    %429 = vmatmul.mubr.bf16.gmra.mrb[0].mxu0 %v127
    %v430 = vpop.f32.mrb[0].mxu0
    %v431 = vadd.f32 %v155, %v430
    %v432 = vpop.f32.mrb[0].mxu0
    %v433 = vpop.f32.mrb[0].mxu0
    %v434 = vadd.f32 %v155, %v433
    %v435 = vpop.f32.mrb[0].mxu0
    %436 = vmatprep.mubr.bf16.mxu0 0
    %437 = vmatmul.mubr.bf16.gmra.mrb[0].mxu0 %v128
    %v438 = vpop.f32.mrb[0].mxu0
    %v439 = vadd.f32 %v155, %v438
    %v440 = vpop.f32.mrb[0].mxu0
    %v441 = vpop.f32.mrb[0].mxu0
    %v442 = vadd.f32 %v155, %v441
    %v443 = vpop.f32.mrb[0].mxu0
    %444 = vmatprep.mubr.bf16.mxu0 0
    %445 = vmatmul.mubr.bf16.gmra.mrb[0].mxu0 %v129
    %v446 = vpop.f32.mrb[0].mxu0
    %v447 = vadd.f32 %v155, %v446
    %v448 = vpop.f32.mrb[0].mxu0
    %v449 = vpop.f32.mrb[0].mxu0
    %v450 = vadd.f32 %v155, %v449
    %v451 = vpop.f32.mrb[0].mxu0
    %452 = vmatprep.mubr.bf16.mxu0 0
    %453 = vmatmul.mubr.bf16.gmra.mrb[0].mxu0 %v130
    %v454 = vpop.f32.mrb[0].mxu0
    %v455 = vadd.f32 %v155, %v454
    %v456 = vpop.f32.mrb[0].mxu0
    %v457 = vpop.f32.mrb[0].mxu0
    %v458 = vadd.f32 %v155, %v457
    %v459 = vpop.f32.mrb[0].mxu0
    %460 = vmatprep.mubr.bf16.mxu0 0
    %461 = vmatmul.mubr.bf16.gmra.mrb[0].mxu0 %v131
    %v462 = vpop.f32.mrb[0].mxu0
    %v463 = vadd.f32 %v155, %v462
    %v464 = vpop.f32.mrb[0].mxu0
    %v465 = vpop.f32.mrb[0].mxu0
    %v466 = vadd.f32 %v155, %v465
    %v467 = vpop.f32.mrb[0].mxu0
    %468 = vmatprep.mubr.bf16.mxu0 0
    %469 = vmatmul.mubr.bf16.gmra.mrb[0].mxu0 %v132
    %v470 = vpop.f32.mrb[0].mxu0
    %v471 = vadd.f32 %v155, %v470
    %v472 = vpop.f32.mrb[0].mxu0
    %v473 = vpop.f32.mrb[0].mxu0
    %v474 = vadd.f32 %v155, %v473
    %v475 = vpop.f32.mrb[0].mxu0
    %476 = vmatprep.mubr.bf16.mxu0 0
    %477 = vmatmul.mubr.bf16.gmra.mrb[0].mxu0 %v133
    %v478 = vpop.f32.mrb[0].mxu0
    %v479 = vadd.f32 %v155, %v478
    %v480 = vpop.f32.mrb[0].mxu0
    %v481 = vpop.f32.mrb[0].mxu0
    %v482 = vadd.f32 %v155, %v481
    %v483 = vpop.f32.mrb[0].mxu0
    %484 = vmatprep.mubr.bf16.mxu0 0
    %485 = vmatmul.mubr.bf16.gmra.mrb[0].mxu0 %v134
    %v486 = vpop.f32.mrb[0].mxu0
    %v487 = vadd.f32 %v155, %v486
    %v488 = vpop.f32.mrb[0].mxu0
    %v489 = vpop.f32.mrb[0].mxu0
    %v490 = vadd.f32 %v155, %v489
    %v491 = vpop.f32.mrb[0].mxu0
    %492 = vdwg.mxu0
    %v493 = vmax.f32 %v239, 0.0
    %v494 = vmax.f32 %v242, 0.0
    %v495 = vmax.f32 %v247, 0.0
    %v496 = vmax.f32 %v250, 0.0
    %v497 = vmax.f32 %v255, 0.0
    %v498 = vmax.f32 %v258, 0.0
    %v499 = vmax.f32 %v263, 0.0
    %v500 = vmax.f32 %v266, 0.0
    %v501 = vmax.f32 %v271, 0.0
    %v502 = vmax.f32 %v274, 0.0
    %v503 = vmax.f32 %v279, 0.0
    %v504 = vmax.f32 %v282, 0.0
    %v505 = vmax.f32 %v287, 0.0
    %v506 = vmax.f32 %v290, 0.0
    %v507 = vmax.f32 %v295, 0.0
    %v508 = vmax.f32 %v298, 0.0
    %v509 = vmax.f32 %v303, 0.0
    %v510 = vmax.f32 %v306, 0.0
    %v511 = vmax.f32 %v311, 0.0
    %v512 = vmax.f32 %v314, 0.0
    %v513 = vmax.f32 %v319, 0.0
    %v514 = vmax.f32 %v322, 0.0
    %v515 = vmax.f32 %v327, 0.0
    %v516 = vmax.f32 %v330, 0.0
    %v517 = vmax.f32 %v335, 0.0
    %v518 = vmax.f32 %v338, 0.0
    %v519 = vmax.f32 %v343, 0.0
    %v520 = vmax.f32 %v346, 0.0
    %v521 = vmax.f32 %v351, 0.0
    %v522 = vmax.f32 %v354, 0.0
    %v523 = vmax.f32 %v359, 0.0
    %v524 = vmax.f32 %v362, 0.0
    %v525 = vmax.f32 %v367, 0.0
    %v526 = vmax.f32 %v370, 0.0
    %v527 = vmax.f32 %v375, 0.0
    %v528 = vmax.f32 %v378, 0.0
    %v529 = vmax.f32 %v383, 0.0
    %v530 = vmax.f32 %v386, 0.0
    %v531 = vmax.f32 %v391, 0.0
    %v532 = vmax.f32 %v394, 0.0
    %v533 = vmax.f32 %v399, 0.0
    %v534 = vmax.f32 %v402, 0.0
    %v535 = vmax.f32 %v407, 0.0
    %v536 = vmax.f32 %v410, 0.0
    %v537 = vmax.f32 %v415, 0.0
    %v538 = vmax.f32 %v418, 0.0
    %v539 = vmax.f32 %v423, 0.0
    %v540 = vmax.f32 %v426, 0.0
    %v541 = vmax.f32 %v431, 0.0
    %v542 = vmax.f32 %v434, 0.0
    %v543 = vmax.f32 %v439, 0.0
    %v544 = vmax.f32 %v442, 0.0
    %v545 = vmax.f32 %v447, 0.0
    %v546 = vmax.f32 %v450, 0.0
    %v547 = vmax.f32 %v455, 0.0
    %v548 = vmax.f32 %v458, 0.0
    %v549 = vmax.f32 %v463, 0.0
    %v550 = vmax.f32 %v466, 0.0
    %v551 = vmax.f32 %v471, 0.0
    %v552 = vmax.f32 %v474, 0.0
    %v553 = vmax.f32 %v479, 0.0
    %v554 = vmax.f32 %v482, 0.0
    %v555 = vmax.f32 %v487, 0.0
    %v556 = vmax.f32 %v490, 0.0
    %v557 = vpack.c.bf16 %v494, %v493
    %v558 = vpack.c.bf16 %v496, %v495
    %v559 = vpack.c.bf16 %v498, %v497
    %v560 = vpack.c.bf16 %v500, %v499
    %v561 = vpack.c.bf16 %v502, %v501
    %v562 = vpack.c.bf16 %v504, %v503
    %v563 = vpack.c.bf16 %v506, %v505
    %v564 = vpack.c.bf16 %v508, %v507
    %v565 = vpack.c.bf16 %v510, %v509
    %v566 = vpack.c.bf16 %v512, %v511
    %v567 = vpack.c.bf16 %v514, %v513
    %v568 = vpack.c.bf16 %v516, %v515
    %v569 = vpack.c.bf16 %v518, %v517
    %v570 = vpack.c.bf16 %v520, %v519
    %v571 = vpack.c.bf16 %v522, %v521
    %v572 = vpack.c.bf16 %v524, %v523
    %v573 = vpack.c.bf16 %v526, %v525
    %v574 = vpack.c.bf16 %v528, %v527
    %v575 = vpack.c.bf16 %v530, %v529
    %v576 = vpack.c.bf16 %v532, %v531
    %v577 = vpack.c.bf16 %v534, %v533
    %v578 = vpack.c.bf16 %v536, %v535
    %v579 = vpack.c.bf16 %v538, %v537
    %v580 = vpack.c.bf16 %v540, %v539
    %v581 = vpack.c.bf16 %v542, %v541
    %v582 = vpack.c.bf16 %v544, %v543
    %v583 = vpack.c.bf16 %v546, %v545
    %v584 = vpack.c.bf16 %v548, %v547
    %v585 = vpack.c.bf16 %v550, %v549
    %v586 = vpack.c.bf16 %v552, %v551
    %v587 = vpack.c.bf16 %v554, %v553
    %v588 = vpack.c.bf16 %v556, %v555
    %v589 = vld [vmem:[%s3] sm:$0xf]
    %v590 = vld [vmem:[%s3 + $0x4] sm:$0xf]
    %v591 = vld [vmem:[%s3 + $0x8] sm:$0xf]
    %v592 = vld [vmem:[%s3 + $0xc] sm:$0xf]
    %v593 = vld [vmem:[%s3 + $0x10] sm:$0xf]
    %v594 = vld [vmem:[%s3 + $0x14] sm:$0xf]
    %v595 = vld [vmem:[%s3 + $0x18] sm:$0xf]
    %v596 = vld [vmem:[%s3 + $0x1c] sm:$0xf]
    %v597 = vld [vmem:[%s3 + $0x20] sm:$0xf]
    %v598 = vld [vmem:[%s3 + $0x24] sm:$0xf]
    %v599 = vld [vmem:[%s3 + $0x28] sm:$0xf]
    %v600 = vld [vmem:[%s3 + $0x2c] sm:$0xf]
    %v601 = vld [vmem:[%s3 + $0x30] sm:$0xf]
    %v602 = vld [vmem:[%s3 + $0x34] sm:$0xf]
    %v603 = vld [vmem:[%s3 + $0x38] sm:$0xf]
    %v604 = vld [vmem:[%s3 + $0x3c] sm:$0xf]
    %v605 = vld [vmem:[%s1 + $0x1] sm:$0x1]
    %v606 = vlaneseq
    %v607 = vshrl.u32 %v606, 7
    %v608 = vsub.s32 0, %v607
    %v609 = vrot.slane %v605, %v608
    %v626 = vunpack.c.l.b16 %v589
    %v627 = vunpack.c.l.b16 %v590
    %v628 = vunpack.c.l.b16 %v591
    %v629 = vunpack.c.l.b16 %v592
    %v630 = vunpack.c.l.b16 %v593
    %v631 = vunpack.c.l.b16 %v594
    %v632 = vunpack.c.l.b16 %v595
    %v633 = vunpack.c.l.b16 %v596
    %v634 = vunpack.c.l.b16 %v597
    %v635 = vunpack.c.l.b16 %v598
    %v636 = vunpack.c.l.b16 %v599
    %v637 = vunpack.c.l.b16 %v600
    %v638 = vunpack.c.l.b16 %v601
    %v639 = vunpack.c.l.b16 %v602
    %v640 = vunpack.c.l.b16 %v603
    %v641 = vunpack.c.l.b16 %v604
    %v642 = vpack.c.b16 %v627, %v626
    %v643 = vpack.c.b16 %v629, %v628
    %v644 = vpack.c.b16 %v631, %v630
    %v645 = vpack.c.b16 %v633, %v632
    %v646 = vpack.c.b16 %v635, %v634
    %v647 = vpack.c.b16 %v637, %v636
    %v648 = vpack.c.b16 %v639, %v638
    %v649 = vpack.c.b16 %v641, %v640
    %658 = vmatprep.subr.bf16.mxu0 0
    %659 = vmatpush1.bf16.msra.mxu0 %v642
    %660 = vmatprep.subr.bf16.mxu0 0
    %661 = vmatpush1.bf16.msra.mxu0 %v643
    %662 = vmatprep.subr.bf16.mxu0 0
    %663 = vmatpush1.bf16.msra.mxu0 %v644
    %664 = vmatprep.subr.bf16.mxu0 0
    %665 = vmatpush1.bf16.msra.mxu0 %v645
    %666 = vmatprep.subr.bf16.mxu0 0
    %667 = vmatpush1.bf16.msra.mxu0 %v646
    %668 = vmatprep.subr.bf16.mxu0 0
    %669 = vmatpush1.bf16.msra.mxu0 %v647
    %670 = vmatprep.subr.bf16.mxu0 0
    %671 = vmatpush1.bf16.msra.mxu0 %v648
    %672 = vmatprep.subr.bf16.mxu0 0
    %673 = vmatpush1.bf16.msra.mxu0 %v649
    %674 = vmatprep.subr.bf16.mxu0 0
    %675 = vmatpush1.bf16.msra.mxu0 0
    %676 = vmatprep.subr.bf16.mxu0 0
    %677 = vmatpush1.bf16.msra.mxu0 0
    %678 = vmatprep.subr.bf16.mxu0 0
    %679 = vmatpush1.bf16.msra.mxu0 0
    %680 = vmatprep.subr.bf16.mxu0 0
    %681 = vmatpush1.bf16.msra.mxu0 0
    %682 = vmatprep.subr.bf16.mxu0 0
    %683 = vmatpush1.bf16.msra.mxu0 0
    %684 = vmatprep.subr.bf16.mxu0 0
    %685 = vmatpush1.bf16.msra.mxu0 0
    %686 = vmatprep.subr.bf16.mxu0 0
    %687 = vmatpush1.bf16.msra.mxu0 0
    %688 = vmatprep.subr.bf16.mxu0 0
    %689 = vmatpush1.bf16.msra.mxu0 0
    %690 = vmatprep.mubr.bf16.mxu0 0
    %691 = vmatmul.mubr.bf16.gmra.mrb[0].mxu0 %v557
    %v692 = vpop.f32.mrb[0].mxu0
    %v693 = vadd.f32 %v609, %v692
    %v694 = vpop.f32.mrb[0].mxu0
    %v695 = vpop.f32.mrb[0].mxu0
    %v696 = vadd.f32 %v609, %v695
    %v697 = vpop.f32.mrb[0].mxu0
    %698 = vmatprep.mubr.bf16.mxu0 0
    %699 = vmatmul.mubr.bf16.gmra.mrb[0].mxu0 %v558
    %v700 = vpop.f32.mrb[0].mxu0
    %v701 = vadd.f32 %v609, %v700
    %v702 = vpop.f32.mrb[0].mxu0
    %v703 = vpop.f32.mrb[0].mxu0
    %v704 = vadd.f32 %v609, %v703
    %v705 = vpop.f32.mrb[0].mxu0
    %706 = vmatprep.mubr.bf16.mxu0 0
    %707 = vmatmul.mubr.bf16.gmra.mrb[0].mxu0 %v559
    %v708 = vpop.f32.mrb[0].mxu0
    %v709 = vadd.f32 %v609, %v708
    %v710 = vpop.f32.mrb[0].mxu0
    %v711 = vpop.f32.mrb[0].mxu0
    %v712 = vadd.f32 %v609, %v711
    %v713 = vpop.f32.mrb[0].mxu0
    %714 = vmatprep.mubr.bf16.mxu0 0
    %715 = vmatmul.mubr.bf16.gmra.mrb[0].mxu0 %v560
    %v716 = vpop.f32.mrb[0].mxu0
    %v717 = vadd.f32 %v609, %v716
    %v718 = vpop.f32.mrb[0].mxu0
    %v719 = vpop.f32.mrb[0].mxu0
    %v720 = vadd.f32 %v609, %v719
    %v721 = vpop.f32.mrb[0].mxu0
    %722 = vmatprep.mubr.bf16.mxu0 0
    %723 = vmatmul.mubr.bf16.gmra.mrb[0].mxu0 %v561
    %v724 = vpop.f32.mrb[0].mxu0
    %v725 = vadd.f32 %v609, %v724
    %v726 = vpop.f32.mrb[0].mxu0
    %v727 = vpop.f32.mrb[0].mxu0
    %v728 = vadd.f32 %v609, %v727
    %v729 = vpop.f32.mrb[0].mxu0
    %730 = vmatprep.mubr.bf16.mxu0 0
    %731 = vmatmul.mubr.bf16.gmra.mrb[0].mxu0 %v562
    %v732 = vpop.f32.mrb[0].mxu0
    %v733 = vadd.f32 %v609, %v732
    %v734 = vpop.f32.mrb[0].mxu0
    %v735 = vpop.f32.mrb[0].mxu0
    %v736 = vadd.f32 %v609, %v735
    %v737 = vpop.f32.mrb[0].mxu0
    %738 = vmatprep.mubr.bf16.mxu0 0
    %739 = vmatmul.mubr.bf16.gmra.mrb[0].mxu0 %v563
    %v740 = vpop.f32.mrb[0].mxu0
    %v741 = vadd.f32 %v609, %v740
    %v742 = vpop.f32.mrb[0].mxu0
    %v743 = vpop.f32.mrb[0].mxu0
    %v744 = vadd.f32 %v609, %v743
    %v745 = vpop.f32.mrb[0].mxu0
    %746 = vmatprep.mubr.bf16.mxu0 0
    %747 = vmatmul.mubr.bf16.gmra.mrb[0].mxu0 %v564
    %v748 = vpop.f32.mrb[0].mxu0
    %v749 = vadd.f32 %v609, %v748
    %v750 = vpop.f32.mrb[0].mxu0
    %v751 = vpop.f32.mrb[0].mxu0
    %v752 = vadd.f32 %v609, %v751
    %v753 = vpop.f32.mrb[0].mxu0
    %754 = vmatprep.mubr.bf16.mxu0 0
    %755 = vmatmul.mubr.bf16.gmra.mrb[0].mxu0 %v565
    %v756 = vpop.f32.mrb[0].mxu0
    %v757 = vadd.f32 %v609, %v756
    %v758 = vpop.f32.mrb[0].mxu0
    %v759 = vpop.f32.mrb[0].mxu0
    %v760 = vadd.f32 %v609, %v759
    %v761 = vpop.f32.mrb[0].mxu0
    %762 = vmatprep.mubr.bf16.mxu0 0
    %763 = vmatmul.mubr.bf16.gmra.mrb[0].mxu0 %v566
    %v764 = vpop.f32.mrb[0].mxu0
    %v765 = vadd.f32 %v609, %v764
    %v766 = vpop.f32.mrb[0].mxu0
    %v767 = vpop.f32.mrb[0].mxu0
    %v768 = vadd.f32 %v609, %v767
    %v769 = vpop.f32.mrb[0].mxu0
    %770 = vmatprep.mubr.bf16.mxu0 0
    %771 = vmatmul.mubr.bf16.gmra.mrb[0].mxu0 %v567
    %v772 = vpop.f32.mrb[0].mxu0
    %v773 = vadd.f32 %v609, %v772
    %v774 = vpop.f32.mrb[0].mxu0
    %v775 = vpop.f32.mrb[0].mxu0
    %v776 = vadd.f32 %v609, %v775
    %v777 = vpop.f32.mrb[0].mxu0
    %778 = vmatprep.mubr.bf16.mxu0 0
    %779 = vmatmul.mubr.bf16.gmra.mrb[0].mxu0 %v568
    %v780 = vpop.f32.mrb[0].mxu0
    %v781 = vadd.f32 %v609, %v780
    %v782 = vpop.f32.mrb[0].mxu0
    %v783 = vpop.f32.mrb[0].mxu0
    %v784 = vadd.f32 %v609, %v783
    %v785 = vpop.f32.mrb[0].mxu0
    %786 = vmatprep.mubr.bf16.mxu0 0
    %787 = vmatmul.mubr.bf16.gmra.mrb[0].mxu0 %v569
    %v788 = vpop.f32.mrb[0].mxu0
    %v789 = vadd.f32 %v609, %v788
    %v790 = vpop.f32.mrb[0].mxu0
    %v791 = vpop.f32.mrb[0].mxu0
    %v792 = vadd.f32 %v609, %v791
    %v793 = vpop.f32.mrb[0].mxu0
    %794 = vmatprep.mubr.bf16.mxu0 0
    %795 = vmatmul.mubr.bf16.gmra.mrb[0].mxu0 %v570
    %v796 = vpop.f32.mrb[0].mxu0
    %v797 = vadd.f32 %v609, %v796
    %v798 = vpop.f32.mrb[0].mxu0
    %v799 = vpop.f32.mrb[0].mxu0
    %v800 = vadd.f32 %v609, %v799
    %v801 = vpop.f32.mrb[0].mxu0
    %802 = vmatprep.mubr.bf16.mxu0 0
    %803 = vmatmul.mubr.bf16.gmra.mrb[0].mxu0 %v571
    %v804 = vpop.f32.mrb[0].mxu0
    %v805 = vadd.f32 %v609, %v804
    %v806 = vpop.f32.mrb[0].mxu0
    %v807 = vpop.f32.mrb[0].mxu0
    %v808 = vadd.f32 %v609, %v807
    %v809 = vpop.f32.mrb[0].mxu0
    %810 = vmatprep.mubr.bf16.mxu0 0
    %811 = vmatmul.mubr.bf16.gmra.mrb[0].mxu0 %v572
    %v812 = vpop.f32.mrb[0].mxu0
    %v813 = vadd.f32 %v609, %v812
    %v814 = vpop.f32.mrb[0].mxu0
    %v815 = vpop.f32.mrb[0].mxu0
    %v816 = vadd.f32 %v609, %v815
    %v817 = vpop.f32.mrb[0].mxu0
    %818 = vmatprep.mubr.bf16.mxu0 0
    %819 = vmatmul.mubr.bf16.gmra.mrb[0].mxu0 %v573
    %v820 = vpop.f32.mrb[0].mxu0
    %v821 = vadd.f32 %v609, %v820
    %v822 = vpop.f32.mrb[0].mxu0
    %v823 = vpop.f32.mrb[0].mxu0
    %v824 = vadd.f32 %v609, %v823
    %v825 = vpop.f32.mrb[0].mxu0
    %826 = vmatprep.mubr.bf16.mxu0 0
    %827 = vmatmul.mubr.bf16.gmra.mrb[0].mxu0 %v574
    %v828 = vpop.f32.mrb[0].mxu0
    %v829 = vadd.f32 %v609, %v828
    %v830 = vpop.f32.mrb[0].mxu0
    %v831 = vpop.f32.mrb[0].mxu0
    %v832 = vadd.f32 %v609, %v831
    %v833 = vpop.f32.mrb[0].mxu0
    %834 = vmatprep.mubr.bf16.mxu0 0
    %835 = vmatmul.mubr.bf16.gmra.mrb[0].mxu0 %v575
    %v836 = vpop.f32.mrb[0].mxu0
    %v837 = vadd.f32 %v609, %v836
    %v838 = vpop.f32.mrb[0].mxu0
    %v839 = vpop.f32.mrb[0].mxu0
    %v840 = vadd.f32 %v609, %v839
    %v841 = vpop.f32.mrb[0].mxu0
    %842 = vmatprep.mubr.bf16.mxu0 0
    %843 = vmatmul.mubr.bf16.gmra.mrb[0].mxu0 %v576
    %v844 = vpop.f32.mrb[0].mxu0
    %v845 = vadd.f32 %v609, %v844
    %v846 = vpop.f32.mrb[0].mxu0
    %v847 = vpop.f32.mrb[0].mxu0
    %v848 = vadd.f32 %v609, %v847
    %v849 = vpop.f32.mrb[0].mxu0
    %850 = vmatprep.mubr.bf16.mxu0 0
    %851 = vmatmul.mubr.bf16.gmra.mrb[0].mxu0 %v577
    %v852 = vpop.f32.mrb[0].mxu0
    %v853 = vadd.f32 %v609, %v852
    %v854 = vpop.f32.mrb[0].mxu0
    %v855 = vpop.f32.mrb[0].mxu0
    %v856 = vadd.f32 %v609, %v855
    %v857 = vpop.f32.mrb[0].mxu0
    %858 = vmatprep.mubr.bf16.mxu0 0
    %859 = vmatmul.mubr.bf16.gmra.mrb[0].mxu0 %v578
    %v860 = vpop.f32.mrb[0].mxu0
    %v861 = vadd.f32 %v609, %v860
    %v862 = vpop.f32.mrb[0].mxu0
    %v863 = vpop.f32.mrb[0].mxu0
    %v864 = vadd.f32 %v609, %v863
    %v865 = vpop.f32.mrb[0].mxu0
    %866 = vmatprep.mubr.bf16.mxu0 0
    %867 = vmatmul.mubr.bf16.gmra.mrb[0].mxu0 %v579
    %v868 = vpop.f32.mrb[0].mxu0
    %v869 = vadd.f32 %v609, %v868
    %v870 = vpop.f32.mrb[0].mxu0
    %v871 = vpop.f32.mrb[0].mxu0
    %v872 = vadd.f32 %v609, %v871
    %v873 = vpop.f32.mrb[0].mxu0
    %874 = vmatprep.mubr.bf16.mxu0 0
    %875 = vmatmul.mubr.bf16.gmra.mrb[0].mxu0 %v580
    %v876 = vpop.f32.mrb[0].mxu0
    %v877 = vadd.f32 %v609, %v876
    %v878 = vpop.f32.mrb[0].mxu0
    %v879 = vpop.f32.mrb[0].mxu0
    %v880 = vadd.f32 %v609, %v879
    %v881 = vpop.f32.mrb[0].mxu0
    %882 = vmatprep.mubr.bf16.mxu0 0
    %883 = vmatmul.mubr.bf16.gmra.mrb[0].mxu0 %v581
    %v884 = vpop.f32.mrb[0].mxu0
    %v885 = vadd.f32 %v609, %v884
    %v886 = vpop.f32.mrb[0].mxu0
    %v887 = vpop.f32.mrb[0].mxu0
    %v888 = vadd.f32 %v609, %v887
    %v889 = vpop.f32.mrb[0].mxu0
    %890 = vmatprep.mubr.bf16.mxu0 0
    %891 = vmatmul.mubr.bf16.gmra.mrb[0].mxu0 %v582
    %v892 = vpop.f32.mrb[0].mxu0
    %v893 = vadd.f32 %v609, %v892
    %v894 = vpop.f32.mrb[0].mxu0
    %v895 = vpop.f32.mrb[0].mxu0
    %v896 = vadd.f32 %v609, %v895
    %v897 = vpop.f32.mrb[0].mxu0
    %898 = vmatprep.mubr.bf16.mxu0 0
    %899 = vmatmul.mubr.bf16.gmra.mrb[0].mxu0 %v583
    %v900 = vpop.f32.mrb[0].mxu0
    %v901 = vadd.f32 %v609, %v900
    %v902 = vpop.f32.mrb[0].mxu0
    %v903 = vpop.f32.mrb[0].mxu0
    %v904 = vadd.f32 %v609, %v903
    %v905 = vpop.f32.mrb[0].mxu0
    %906 = vmatprep.mubr.bf16.mxu0 0
    %907 = vmatmul.mubr.bf16.gmra.mrb[0].mxu0 %v584
    %v908 = vpop.f32.mrb[0].mxu0
    %v909 = vadd.f32 %v609, %v908
    %v910 = vpop.f32.mrb[0].mxu0
    %v911 = vpop.f32.mrb[0].mxu0
    %v912 = vadd.f32 %v609, %v911
    %v913 = vpop.f32.mrb[0].mxu0
    %914 = vmatprep.mubr.bf16.mxu0 0
    %915 = vmatmul.mubr.bf16.gmra.mrb[0].mxu0 %v585
    %v916 = vpop.f32.mrb[0].mxu0
    %v917 = vadd.f32 %v609, %v916
    %v918 = vpop.f32.mrb[0].mxu0
    %v919 = vpop.f32.mrb[0].mxu0
    %v920 = vadd.f32 %v609, %v919
    %v921 = vpop.f32.mrb[0].mxu0
    %922 = vmatprep.mubr.bf16.mxu0 0
    %923 = vmatmul.mubr.bf16.gmra.mrb[0].mxu0 %v586
    %v924 = vpop.f32.mrb[0].mxu0
    %v925 = vadd.f32 %v609, %v924
    %v926 = vpop.f32.mrb[0].mxu0
    %v927 = vpop.f32.mrb[0].mxu0
    %v928 = vadd.f32 %v609, %v927
    %v929 = vpop.f32.mrb[0].mxu0
    %930 = vmatprep.mubr.bf16.mxu0 0
    %931 = vmatmul.mubr.bf16.gmra.mrb[0].mxu0 %v587
    %v932 = vpop.f32.mrb[0].mxu0
    %v933 = vadd.f32 %v609, %v932
    %v934 = vpop.f32.mrb[0].mxu0
    %v935 = vpop.f32.mrb[0].mxu0
    %v936 = vadd.f32 %v609, %v935
    %v937 = vpop.f32.mrb[0].mxu0
    %938 = vmatprep.mubr.bf16.mxu0 0
    %939 = vmatmul.mubr.bf16.gmra.mrb[0].mxu0 %v588
    %v940 = vpop.f32.mrb[0].mxu0
    %v941 = vadd.f32 %v609, %v940
    %v942 = vpop.f32.mrb[0].mxu0
    %v943 = vpop.f32.mrb[0].mxu0
    %v944 = vadd.f32 %v609, %v943
    %v945 = vpop.f32.mrb[0].mxu0
    %946 = vdwg.mxu0
    %v947 = vmax.f32 %v693, 0.0
    %v948 = vmax.f32 %v696, 0.0
    %v949 = vmax.f32 %v701, 0.0
    %v950 = vmax.f32 %v704, 0.0
    %v951 = vmax.f32 %v709, 0.0
    %v952 = vmax.f32 %v712, 0.0
    %v953 = vmax.f32 %v717, 0.0
    %v954 = vmax.f32 %v720, 0.0
    %v955 = vmax.f32 %v725, 0.0
    %v956 = vmax.f32 %v728, 0.0
    %v957 = vmax.f32 %v733, 0.0
    %v958 = vmax.f32 %v736, 0.0
    %v959 = vmax.f32 %v741, 0.0
    %v960 = vmax.f32 %v744, 0.0
    %v961 = vmax.f32 %v749, 0.0
    %v962 = vmax.f32 %v752, 0.0
    %v963 = vmax.f32 %v757, 0.0
    %v964 = vmax.f32 %v760, 0.0
    %v965 = vmax.f32 %v765, 0.0
    %v966 = vmax.f32 %v768, 0.0
    %v967 = vmax.f32 %v773, 0.0
    %v968 = vmax.f32 %v776, 0.0
    %v969 = vmax.f32 %v781, 0.0
    %v970 = vmax.f32 %v784, 0.0
    %v971 = vmax.f32 %v789, 0.0
    %v972 = vmax.f32 %v792, 0.0
    %v973 = vmax.f32 %v797, 0.0
    %v974 = vmax.f32 %v800, 0.0
    %v975 = vmax.f32 %v805, 0.0
    %v976 = vmax.f32 %v808, 0.0
    %v977 = vmax.f32 %v813, 0.0
    %v978 = vmax.f32 %v816, 0.0
    %v979 = vmax.f32 %v821, 0.0
    %v980 = vmax.f32 %v824, 0.0
    %v981 = vmax.f32 %v829, 0.0
    %v982 = vmax.f32 %v832, 0.0
    %v983 = vmax.f32 %v837, 0.0
    %v984 = vmax.f32 %v840, 0.0
    %v985 = vmax.f32 %v845, 0.0
    %v986 = vmax.f32 %v848, 0.0
    %v987 = vmax.f32 %v853, 0.0
    %v988 = vmax.f32 %v856, 0.0
    %v989 = vmax.f32 %v861, 0.0
    %v990 = vmax.f32 %v864, 0.0
    %v991 = vmax.f32 %v869, 0.0
    %v992 = vmax.f32 %v872, 0.0
    %v993 = vmax.f32 %v877, 0.0
    %v994 = vmax.f32 %v880, 0.0
    %v995 = vmax.f32 %v885, 0.0
    %v996 = vmax.f32 %v888, 0.0
    %v997 = vmax.f32 %v893, 0.0
    %v998 = vmax.f32 %v896, 0.0
    %v999 = vmax.f32 %v901, 0.0
    %v1000 = vmax.f32 %v904, 0.0
    %v1001 = vmax.f32 %v909, 0.0
    %v1002 = vmax.f32 %v912, 0.0
    %v1003 = vmax.f32 %v917, 0.0
    %v1004 = vmax.f32 %v920, 0.0
    %v1005 = vmax.f32 %v925, 0.0
    %v1006 = vmax.f32 %v928, 0.0
    %v1007 = vmax.f32 %v933, 0.0
    %v1008 = vmax.f32 %v936, 0.0
    %v1009 = vmax.f32 %v941, 0.0
    %v1010 = vmax.f32 %v944, 0.0
    %v1011 = vpack.c.bf16 %v948, %v947
    %v1012 = vpack.c.bf16 %v950, %v949
    %v1013 = vpack.c.bf16 %v952, %v951
    %v1014 = vpack.c.bf16 %v954, %v953
    %v1015 = vpack.c.bf16 %v956, %v955
    %v1016 = vpack.c.bf16 %v958, %v957
    %v1017 = vpack.c.bf16 %v960, %v959
    %v1018 = vpack.c.bf16 %v962, %v961
    %v1019 = vpack.c.bf16 %v964, %v963
    %v1020 = vpack.c.bf16 %v966, %v965
    %v1021 = vpack.c.bf16 %v968, %v967
    %v1022 = vpack.c.bf16 %v970, %v969
    %v1023 = vpack.c.bf16 %v972, %v971
    %v1024 = vpack.c.bf16 %v974, %v973
    %v1025 = vpack.c.bf16 %v976, %v975
    %v1026 = vpack.c.bf16 %v978, %v977
    %v1027 = vpack.c.bf16 %v980, %v979
    %v1028 = vpack.c.bf16 %v982, %v981
    %v1029 = vpack.c.bf16 %v984, %v983
    %v1030 = vpack.c.bf16 %v986, %v985
    %v1031 = vpack.c.bf16 %v988, %v987
    %v1032 = vpack.c.bf16 %v990, %v989
    %v1033 = vpack.c.bf16 %v992, %v991
    %v1034 = vpack.c.bf16 %v994, %v993
    %v1035 = vpack.c.bf16 %v996, %v995
    %v1036 = vpack.c.bf16 %v998, %v997
    %v1037 = vpack.c.bf16 %v1000, %v999
    %v1038 = vpack.c.bf16 %v1002, %v1001
    %v1039 = vpack.c.bf16 %v1004, %v1003
    %v1040 = vpack.c.bf16 %v1006, %v1005
    %v1041 = vpack.c.bf16 %v1008, %v1007
    %v1042 = vpack.c.bf16 %v1010, %v1009
    %v1043 = vld [vmem:[%s4] sm:$0xf]
    %v1044 = vld [vmem:[%s4 + $0x4] sm:$0xf]
    %v1045 = vld [vmem:[%s4 + $0x8] sm:$0xf]
    %v1046 = vld [vmem:[%s4 + $0xc] sm:$0xf]
    %v1047 = vld [vmem:[%s4 + $0x10] sm:$0xf]
    %v1048 = vld [vmem:[%s4 + $0x14] sm:$0xf]
    %v1049 = vld [vmem:[%s4 + $0x18] sm:$0xf]
    %v1050 = vld [vmem:[%s4 + $0x1c] sm:$0xf]
    %v1051 = vld [vmem:[%s4 + $0x20] sm:$0xf]
    %v1052 = vld [vmem:[%s4 + $0x24] sm:$0xf]
    %v1053 = vld [vmem:[%s4 + $0x28] sm:$0xf]
    %v1054 = vld [vmem:[%s4 + $0x2c] sm:$0xf]
    %v1055 = vld [vmem:[%s4 + $0x30] sm:$0xf]
    %v1056 = vld [vmem:[%s4 + $0x34] sm:$0xf]
    %v1057 = vld [vmem:[%s4 + $0x38] sm:$0xf]
    %v1058 = vld [vmem:[%s4 + $0x3c] sm:$0xf]
    %v1059 = vld [vmem:[%s1 + $0x2] sm:$0x1]
    %v1060 = vlaneseq
    %v1061 = vshrl.u32 %v1060, 7
    %v1062 = vsub.s32 0, %v1061
    %v1063 = vrot.slane %v1059, %v1062
    %v1080 = vunpack.c.l.b16 %v1043
    %v1081 = vunpack.c.l.b16 %v1044
    %v1082 = vunpack.c.l.b16 %v1045
    %v1083 = vunpack.c.l.b16 %v1046
    %v1084 = vunpack.c.l.b16 %v1047
    %v1085 = vunpack.c.l.b16 %v1048
    %v1086 = vunpack.c.l.b16 %v1049
    %v1087 = vunpack.c.l.b16 %v1050
    %v1088 = vunpack.c.l.b16 %v1051
    %v1089 = vunpack.c.l.b16 %v1052
    %v1090 = vunpack.c.l.b16 %v1053
    %v1091 = vunpack.c.l.b16 %v1054
    %v1092 = vunpack.c.l.b16 %v1055
    %v1093 = vunpack.c.l.b16 %v1056
    %v1094 = vunpack.c.l.b16 %v1057
    %v1095 = vunpack.c.l.b16 %v1058
    %v1096 = vpack.c.b16 %v1081, %v1080
    %v1097 = vpack.c.b16 %v1083, %v1082
    %v1098 = vpack.c.b16 %v1085, %v1084
    %v1099 = vpack.c.b16 %v1087, %v1086
    %v1100 = vpack.c.b16 %v1089, %v1088
    %v1101 = vpack.c.b16 %v1091, %v1090
    %v1102 = vpack.c.b16 %v1093, %v1092
    %v1103 = vpack.c.b16 %v1095, %v1094
    %1112 = vmatprep.subr.bf16.mxu0 0
    %1113 = vmatpush1.bf16.msra.mxu0 %v1096
    %1114 = vmatprep.subr.bf16.mxu0 0
    %1115 = vmatpush1.bf16.msra.mxu0 %v1097
    %1116 = vmatprep.subr.bf16.mxu0 0
    %1117 = vmatpush1.bf16.msra.mxu0 %v1098
    %1118 = vmatprep.subr.bf16.mxu0 0
    %1119 = vmatpush1.bf16.msra.mxu0 %v1099
    %1120 = vmatprep.subr.bf16.mxu0 0
    %1121 = vmatpush1.bf16.msra.mxu0 %v1100
    %1122 = vmatprep.subr.bf16.mxu0 0
    %1123 = vmatpush1.bf16.msra.mxu0 %v1101
    %1124 = vmatprep.subr.bf16.mxu0 0
    %1125 = vmatpush1.bf16.msra.mxu0 %v1102
    %1126 = vmatprep.subr.bf16.mxu0 0
    %1127 = vmatpush1.bf16.msra.mxu0 %v1103
    %1128 = vmatprep.subr.bf16.mxu0 0
    %1129 = vmatpush1.bf16.msra.mxu0 0
    %1130 = vmatprep.subr.bf16.mxu0 0
    %1131 = vmatpush1.bf16.msra.mxu0 0
    %1132 = vmatprep.subr.bf16.mxu0 0
    %1133 = vmatpush1.bf16.msra.mxu0 0
    %1134 = vmatprep.subr.bf16.mxu0 0
    %1135 = vmatpush1.bf16.msra.mxu0 0
    %1136 = vmatprep.subr.bf16.mxu0 0
    %1137 = vmatpush1.bf16.msra.mxu0 0
    %1138 = vmatprep.subr.bf16.mxu0 0
    %1139 = vmatpush1.bf16.msra.mxu0 0
    %1140 = vmatprep.subr.bf16.mxu0 0
    %1141 = vmatpush1.bf16.msra.mxu0 0
    %1142 = vmatprep.subr.bf16.mxu0 0
    %1143 = vmatpush1.bf16.msra.mxu0 0
    %1144 = vmatprep.mubr.bf16.mxu0 0
    %1145 = vmatmul.mubr.bf16.gmra.mrb[0].mxu0 %v1011
    %v1146 = vpop.f32.mrb[0].mxu0
    %v1147 = vadd.f32 %v1063, %v1146
    %v1148 = vpop.f32.mrb[0].mxu0
    %v1149 = vpop.f32.mrb[0].mxu0
    %v1150 = vadd.f32 %v1063, %v1149
    %v1151 = vpop.f32.mrb[0].mxu0
    %1152 = vmatprep.mubr.bf16.mxu0 0
    %1153 = vmatmul.mubr.bf16.gmra.mrb[0].mxu0 %v1012
    %v1154 = vpop.f32.mrb[0].mxu0
    %v1155 = vadd.f32 %v1063, %v1154
    %v1156 = vpop.f32.mrb[0].mxu0
    %v1157 = vpop.f32.mrb[0].mxu0
    %v1158 = vadd.f32 %v1063, %v1157
    %v1159 = vpop.f32.mrb[0].mxu0
    %1160 = vmatprep.mubr.bf16.mxu0 0
    %1161 = vmatmul.mubr.bf16.gmra.mrb[0].mxu0 %v1013
    %v1162 = vpop.f32.mrb[0].mxu0
    %v1163 = vadd.f32 %v1063, %v1162
    %v1164 = vpop.f32.mrb[0].mxu0
    %v1165 = vpop.f32.mrb[0].mxu0
    %v1166 = vadd.f32 %v1063, %v1165
    %v1167 = vpop.f32.mrb[0].mxu0
    %1168 = vmatprep.mubr.bf16.mxu0 0
    %1169 = vmatmul.mubr.bf16.gmra.mrb[0].mxu0 %v1014
    %v1170 = vpop.f32.mrb[0].mxu0
    %v1171 = vadd.f32 %v1063, %v1170
    %v1172 = vpop.f32.mrb[0].mxu0
    %v1173 = vpop.f32.mrb[0].mxu0
    %v1174 = vadd.f32 %v1063, %v1173
    %v1175 = vpop.f32.mrb[0].mxu0
    %1176 = vmatprep.mubr.bf16.mxu0 0
    %1177 = vmatmul.mubr.bf16.gmra.mrb[0].mxu0 %v1015
    %v1178 = vpop.f32.mrb[0].mxu0
    %v1179 = vadd.f32 %v1063, %v1178
    %v1180 = vpop.f32.mrb[0].mxu0
    %v1181 = vpop.f32.mrb[0].mxu0
    %v1182 = vadd.f32 %v1063, %v1181
    %v1183 = vpop.f32.mrb[0].mxu0
    %1184 = vmatprep.mubr.bf16.mxu0 0
    %1185 = vmatmul.mubr.bf16.gmra.mrb[0].mxu0 %v1016
    %v1186 = vpop.f32.mrb[0].mxu0
    %v1187 = vadd.f32 %v1063, %v1186
    %v1188 = vpop.f32.mrb[0].mxu0
    %v1189 = vpop.f32.mrb[0].mxu0
    %v1190 = vadd.f32 %v1063, %v1189
    %v1191 = vpop.f32.mrb[0].mxu0
    %1192 = vmatprep.mubr.bf16.mxu0 0
    %1193 = vmatmul.mubr.bf16.gmra.mrb[0].mxu0 %v1017
    %v1194 = vpop.f32.mrb[0].mxu0
    %v1195 = vadd.f32 %v1063, %v1194
    %v1196 = vpop.f32.mrb[0].mxu0
    %v1197 = vpop.f32.mrb[0].mxu0
    %v1198 = vadd.f32 %v1063, %v1197
    %v1199 = vpop.f32.mrb[0].mxu0
    %1200 = vmatprep.mubr.bf16.mxu0 0
    %1201 = vmatmul.mubr.bf16.gmra.mrb[0].mxu0 %v1018
    %v1202 = vpop.f32.mrb[0].mxu0
    %v1203 = vadd.f32 %v1063, %v1202
    %v1204 = vpop.f32.mrb[0].mxu0
    %v1205 = vpop.f32.mrb[0].mxu0
    %v1206 = vadd.f32 %v1063, %v1205
    %v1207 = vpop.f32.mrb[0].mxu0
    %1208 = vmatprep.mubr.bf16.mxu0 0
    %1209 = vmatmul.mubr.bf16.gmra.mrb[0].mxu0 %v1019
    %v1210 = vpop.f32.mrb[0].mxu0
    %v1211 = vadd.f32 %v1063, %v1210
    %v1212 = vpop.f32.mrb[0].mxu0
    %v1213 = vpop.f32.mrb[0].mxu0
    %v1214 = vadd.f32 %v1063, %v1213
    %v1215 = vpop.f32.mrb[0].mxu0
    %1216 = vmatprep.mubr.bf16.mxu0 0
    %1217 = vmatmul.mubr.bf16.gmra.mrb[0].mxu0 %v1020
    %v1218 = vpop.f32.mrb[0].mxu0
    %v1219 = vadd.f32 %v1063, %v1218
    %v1220 = vpop.f32.mrb[0].mxu0
    %v1221 = vpop.f32.mrb[0].mxu0
    %v1222 = vadd.f32 %v1063, %v1221
    %v1223 = vpop.f32.mrb[0].mxu0
    %1224 = vmatprep.mubr.bf16.mxu0 0
    %1225 = vmatmul.mubr.bf16.gmra.mrb[0].mxu0 %v1021
    %v1226 = vpop.f32.mrb[0].mxu0
    %v1227 = vadd.f32 %v1063, %v1226
    %v1228 = vpop.f32.mrb[0].mxu0
    %v1229 = vpop.f32.mrb[0].mxu0
    %v1230 = vadd.f32 %v1063, %v1229
    %v1231 = vpop.f32.mrb[0].mxu0
    %1232 = vmatprep.mubr.bf16.mxu0 0
    %1233 = vmatmul.mubr.bf16.gmra.mrb[0].mxu0 %v1022
    %v1234 = vpop.f32.mrb[0].mxu0
    %v1235 = vadd.f32 %v1063, %v1234
    %v1236 = vpop.f32.mrb[0].mxu0
    %v1237 = vpop.f32.mrb[0].mxu0
    %v1238 = vadd.f32 %v1063, %v1237
    %v1239 = vpop.f32.mrb[0].mxu0
    %1240 = vmatprep.mubr.bf16.mxu0 0
    %1241 = vmatmul.mubr.bf16.gmra.mrb[0].mxu0 %v1023
    %v1242 = vpop.f32.mrb[0].mxu0
    %v1243 = vadd.f32 %v1063, %v1242
    %v1244 = vpop.f32.mrb[0].mxu0
    %v1245 = vpop.f32.mrb[0].mxu0
    %v1246 = vadd.f32 %v1063, %v1245
    %v1247 = vpop.f32.mrb[0].mxu0
    %1248 = vmatprep.mubr.bf16.mxu0 0
    %1249 = vmatmul.mubr.bf16.gmra.mrb[0].mxu0 %v1024
    %v1250 = vpop.f32.mrb[0].mxu0
    %v1251 = vadd.f32 %v1063, %v1250
    %v1252 = vpop.f32.mrb[0].mxu0
    %v1253 = vpop.f32.mrb[0].mxu0
    %v1254 = vadd.f32 %v1063, %v1253
    %v1255 = vpop.f32.mrb[0].mxu0
    %1256 = vmatprep.mubr.bf16.mxu0 0
    %1257 = vmatmul.mubr.bf16.gmra.mrb[0].mxu0 %v1025
    %v1258 = vpop.f32.mrb[0].mxu0
    %v1259 = vadd.f32 %v1063, %v1258
    %v1260 = vpop.f32.mrb[0].mxu0
    %v1261 = vpop.f32.mrb[0].mxu0
    %v1262 = vadd.f32 %v1063, %v1261
    %v1263 = vpop.f32.mrb[0].mxu0
    %1264 = vmatprep.mubr.bf16.mxu0 0
    %1265 = vmatmul.mubr.bf16.gmra.mrb[0].mxu0 %v1026
    %v1266 = vpop.f32.mrb[0].mxu0
    %v1267 = vadd.f32 %v1063, %v1266
    %v1268 = vpop.f32.mrb[0].mxu0
    %v1269 = vpop.f32.mrb[0].mxu0
    %v1270 = vadd.f32 %v1063, %v1269
    %v1271 = vpop.f32.mrb[0].mxu0
    %1272 = vmatprep.mubr.bf16.mxu0 0
    %1273 = vmatmul.mubr.bf16.gmra.mrb[0].mxu0 %v1027
    %v1274 = vpop.f32.mrb[0].mxu0
    %v1275 = vadd.f32 %v1063, %v1274
    %v1276 = vpop.f32.mrb[0].mxu0
    %v1277 = vpop.f32.mrb[0].mxu0
    %v1278 = vadd.f32 %v1063, %v1277
    %v1279 = vpop.f32.mrb[0].mxu0
    %1280 = vmatprep.mubr.bf16.mxu0 0
    %1281 = vmatmul.mubr.bf16.gmra.mrb[0].mxu0 %v1028
    %v1282 = vpop.f32.mrb[0].mxu0
    %v1283 = vadd.f32 %v1063, %v1282
    %v1284 = vpop.f32.mrb[0].mxu0
    %v1285 = vpop.f32.mrb[0].mxu0
    %v1286 = vadd.f32 %v1063, %v1285
    %v1287 = vpop.f32.mrb[0].mxu0
    %1288 = vmatprep.mubr.bf16.mxu0 0
    %1289 = vmatmul.mubr.bf16.gmra.mrb[0].mxu0 %v1029
    %v1290 = vpop.f32.mrb[0].mxu0
    %v1291 = vadd.f32 %v1063, %v1290
    %v1292 = vpop.f32.mrb[0].mxu0
    %v1293 = vpop.f32.mrb[0].mxu0
    %v1294 = vadd.f32 %v1063, %v1293
    %v1295 = vpop.f32.mrb[0].mxu0
    %1296 = vmatprep.mubr.bf16.mxu0 0
    %1297 = vmatmul.mubr.bf16.gmra.mrb[0].mxu0 %v1030
    %v1298 = vpop.f32.mrb[0].mxu0
    %v1299 = vadd.f32 %v1063, %v1298
    %v1300 = vpop.f32.mrb[0].mxu0
    %v1301 = vpop.f32.mrb[0].mxu0
    %v1302 = vadd.f32 %v1063, %v1301
    %v1303 = vpop.f32.mrb[0].mxu0
    %1304 = vmatprep.mubr.bf16.mxu0 0
    %1305 = vmatmul.mubr.bf16.gmra.mrb[0].mxu0 %v1031
    %v1306 = vpop.f32.mrb[0].mxu0
    %v1307 = vadd.f32 %v1063, %v1306
    %v1308 = vpop.f32.mrb[0].mxu0
    %v1309 = vpop.f32.mrb[0].mxu0
    %v1310 = vadd.f32 %v1063, %v1309
    %v1311 = vpop.f32.mrb[0].mxu0
    %1312 = vmatprep.mubr.bf16.mxu0 0
    %1313 = vmatmul.mubr.bf16.gmra.mrb[0].mxu0 %v1032
    %v1314 = vpop.f32.mrb[0].mxu0
    %v1315 = vadd.f32 %v1063, %v1314
    %v1316 = vpop.f32.mrb[0].mxu0
    %v1317 = vpop.f32.mrb[0].mxu0
    %v1318 = vadd.f32 %v1063, %v1317
    %v1319 = vpop.f32.mrb[0].mxu0
    %1320 = vmatprep.mubr.bf16.mxu0 0
    %1321 = vmatmul.mubr.bf16.gmra.mrb[0].mxu0 %v1033
    %v1322 = vpop.f32.mrb[0].mxu0
    %v1323 = vadd.f32 %v1063, %v1322
    %v1324 = vpop.f32.mrb[0].mxu0
    %v1325 = vpop.f32.mrb[0].mxu0
    %v1326 = vadd.f32 %v1063, %v1325
    %v1327 = vpop.f32.mrb[0].mxu0
    %1328 = vmatprep.mubr.bf16.mxu0 0
    %1329 = vmatmul.mubr.bf16.gmra.mrb[0].mxu0 %v1034
    %v1330 = vpop.f32.mrb[0].mxu0
    %v1331 = vadd.f32 %v1063, %v1330
    %v1332 = vpop.f32.mrb[0].mxu0
    %v1333 = vpop.f32.mrb[0].mxu0
    %v1334 = vadd.f32 %v1063, %v1333
    %v1335 = vpop.f32.mrb[0].mxu0
    %1336 = vmatprep.mubr.bf16.mxu0 0
    %1337 = vmatmul.mubr.bf16.gmra.mrb[0].mxu0 %v1035
    %v1338 = vpop.f32.mrb[0].mxu0
    %v1339 = vadd.f32 %v1063, %v1338
    %v1340 = vpop.f32.mrb[0].mxu0
    %v1341 = vpop.f32.mrb[0].mxu0
    %v1342 = vadd.f32 %v1063, %v1341
    %v1343 = vpop.f32.mrb[0].mxu0
    %1344 = vmatprep.mubr.bf16.mxu0 0
    %1345 = vmatmul.mubr.bf16.gmra.mrb[0].mxu0 %v1036
    %v1346 = vpop.f32.mrb[0].mxu0
    %v1347 = vadd.f32 %v1063, %v1346
    %v1348 = vpop.f32.mrb[0].mxu0
    %v1349 = vpop.f32.mrb[0].mxu0
    %v1350 = vadd.f32 %v1063, %v1349
    %v1351 = vpop.f32.mrb[0].mxu0
    %1352 = vmatprep.mubr.bf16.mxu0 0
    %1353 = vmatmul.mubr.bf16.gmra.mrb[0].mxu0 %v1037
    %v1354 = vpop.f32.mrb[0].mxu0
    %v1355 = vadd.f32 %v1063, %v1354
    %v1356 = vpop.f32.mrb[0].mxu0
    %v1357 = vpop.f32.mrb[0].mxu0
    %v1358 = vadd.f32 %v1063, %v1357
    %v1359 = vpop.f32.mrb[0].mxu0
    %1360 = vmatprep.mubr.bf16.mxu0 0
    %1361 = vmatmul.mubr.bf16.gmra.mrb[0].mxu0 %v1038
    %v1362 = vpop.f32.mrb[0].mxu0
    %v1363 = vadd.f32 %v1063, %v1362
    %v1364 = vpop.f32.mrb[0].mxu0
    %v1365 = vpop.f32.mrb[0].mxu0
    %v1366 = vadd.f32 %v1063, %v1365
    %v1367 = vpop.f32.mrb[0].mxu0
    %1368 = vmatprep.mubr.bf16.mxu0 0
    %1369 = vmatmul.mubr.bf16.gmra.mrb[0].mxu0 %v1039
    %v1370 = vpop.f32.mrb[0].mxu0
    %v1371 = vadd.f32 %v1063, %v1370
    %v1372 = vpop.f32.mrb[0].mxu0
    %v1373 = vpop.f32.mrb[0].mxu0
    %v1374 = vadd.f32 %v1063, %v1373
    %v1375 = vpop.f32.mrb[0].mxu0
    %1376 = vmatprep.mubr.bf16.mxu0 0
    %1377 = vmatmul.mubr.bf16.gmra.mrb[0].mxu0 %v1040
    %v1378 = vpop.f32.mrb[0].mxu0
    %v1379 = vadd.f32 %v1063, %v1378
    %v1380 = vpop.f32.mrb[0].mxu0
    %v1381 = vpop.f32.mrb[0].mxu0
    %v1382 = vadd.f32 %v1063, %v1381
    %v1383 = vpop.f32.mrb[0].mxu0
    %1384 = vmatprep.mubr.bf16.mxu0 0
    %1385 = vmatmul.mubr.bf16.gmra.mrb[0].mxu0 %v1041
    %v1386 = vpop.f32.mrb[0].mxu0
    %v1387 = vadd.f32 %v1063, %v1386
    %v1388 = vpop.f32.mrb[0].mxu0
    %v1389 = vpop.f32.mrb[0].mxu0
    %v1390 = vadd.f32 %v1063, %v1389
    %v1391 = vpop.f32.mrb[0].mxu0
    %1392 = vmatprep.mubr.bf16.mxu0 0
    %1393 = vmatmul.mubr.bf16.gmra.mrb[0].mxu0 %v1042
    %v1394 = vpop.f32.mrb[0].mxu0
    %v1395 = vadd.f32 %v1063, %v1394
    %v1396 = vpop.f32.mrb[0].mxu0
    %v1397 = vpop.f32.mrb[0].mxu0
    %v1398 = vadd.f32 %v1063, %v1397
    %v1399 = vpop.f32.mrb[0].mxu0
    %1400 = vdwg.mxu0
    %v1401 = vmax.f32 %v1147, 0.0
    %v1402 = vmax.f32 %v1150, 0.0
    %v1403 = vmax.f32 %v1155, 0.0
    %v1404 = vmax.f32 %v1158, 0.0
    %v1405 = vmax.f32 %v1163, 0.0
    %v1406 = vmax.f32 %v1166, 0.0
    %v1407 = vmax.f32 %v1171, 0.0
    %v1408 = vmax.f32 %v1174, 0.0
    %v1409 = vmax.f32 %v1179, 0.0
    %v1410 = vmax.f32 %v1182, 0.0
    %v1411 = vmax.f32 %v1187, 0.0
    %v1412 = vmax.f32 %v1190, 0.0
    %v1413 = vmax.f32 %v1195, 0.0
    %v1414 = vmax.f32 %v1198, 0.0
    %v1415 = vmax.f32 %v1203, 0.0
    %v1416 = vmax.f32 %v1206, 0.0
    %v1417 = vmax.f32 %v1211, 0.0
    %v1418 = vmax.f32 %v1214, 0.0
    %v1419 = vmax.f32 %v1219, 0.0
    %v1420 = vmax.f32 %v1222, 0.0
    %v1421 = vmax.f32 %v1227, 0.0
    %v1422 = vmax.f32 %v1230, 0.0
    %v1423 = vmax.f32 %v1235, 0.0
    %v1424 = vmax.f32 %v1238, 0.0
    %v1425 = vmax.f32 %v1243, 0.0
    %v1426 = vmax.f32 %v1246, 0.0
    %v1427 = vmax.f32 %v1251, 0.0
    %v1428 = vmax.f32 %v1254, 0.0
    %v1429 = vmax.f32 %v1259, 0.0
    %v1430 = vmax.f32 %v1262, 0.0
    %v1431 = vmax.f32 %v1267, 0.0
    %v1432 = vmax.f32 %v1270, 0.0
    %v1433 = vmax.f32 %v1275, 0.0
    %v1434 = vmax.f32 %v1278, 0.0
    %v1435 = vmax.f32 %v1283, 0.0
    %v1436 = vmax.f32 %v1286, 0.0
    %v1437 = vmax.f32 %v1291, 0.0
    %v1438 = vmax.f32 %v1294, 0.0
    %v1439 = vmax.f32 %v1299, 0.0
    %v1440 = vmax.f32 %v1302, 0.0
    %v1441 = vmax.f32 %v1307, 0.0
    %v1442 = vmax.f32 %v1310, 0.0
    %v1443 = vmax.f32 %v1315, 0.0
    %v1444 = vmax.f32 %v1318, 0.0
    %v1445 = vmax.f32 %v1323, 0.0
    %v1446 = vmax.f32 %v1326, 0.0
    %v1447 = vmax.f32 %v1331, 0.0
    %v1448 = vmax.f32 %v1334, 0.0
    %v1449 = vmax.f32 %v1339, 0.0
    %v1450 = vmax.f32 %v1342, 0.0
    %v1451 = vmax.f32 %v1347, 0.0
    %v1452 = vmax.f32 %v1350, 0.0
    %v1453 = vmax.f32 %v1355, 0.0
    %v1454 = vmax.f32 %v1358, 0.0
    %v1455 = vmax.f32 %v1363, 0.0
    %v1456 = vmax.f32 %v1366, 0.0
    %v1457 = vmax.f32 %v1371, 0.0
    %v1458 = vmax.f32 %v1374, 0.0
    %v1459 = vmax.f32 %v1379, 0.0
    %v1460 = vmax.f32 %v1382, 0.0
    %v1461 = vmax.f32 %v1387, 0.0
    %v1462 = vmax.f32 %v1390, 0.0
    %v1463 = vmax.f32 %v1395, 0.0
    %v1464 = vmax.f32 %v1398, 0.0
    %v1465 = vpack.c.bf16 %v1402, %v1401
    %v1466 = vpack.c.bf16 %v1404, %v1403
    %v1467 = vpack.c.bf16 %v1406, %v1405
    %v1468 = vpack.c.bf16 %v1408, %v1407
    %v1469 = vpack.c.bf16 %v1410, %v1409
    %v1470 = vpack.c.bf16 %v1412, %v1411
    %v1471 = vpack.c.bf16 %v1414, %v1413
    %v1472 = vpack.c.bf16 %v1416, %v1415
    %v1473 = vpack.c.bf16 %v1418, %v1417
    %v1474 = vpack.c.bf16 %v1420, %v1419
    %v1475 = vpack.c.bf16 %v1422, %v1421
    %v1476 = vpack.c.bf16 %v1424, %v1423
    %v1477 = vpack.c.bf16 %v1426, %v1425
    %v1478 = vpack.c.bf16 %v1428, %v1427
    %v1479 = vpack.c.bf16 %v1430, %v1429
    %v1480 = vpack.c.bf16 %v1432, %v1431
    %v1481 = vpack.c.bf16 %v1434, %v1433
    %v1482 = vpack.c.bf16 %v1436, %v1435
    %v1483 = vpack.c.bf16 %v1438, %v1437
    %v1484 = vpack.c.bf16 %v1440, %v1439
    %v1485 = vpack.c.bf16 %v1442, %v1441
    %v1486 = vpack.c.bf16 %v1444, %v1443
    %v1487 = vpack.c.bf16 %v1446, %v1445
    %v1488 = vpack.c.bf16 %v1448, %v1447
    %v1489 = vpack.c.bf16 %v1450, %v1449
    %v1490 = vpack.c.bf16 %v1452, %v1451
    %v1491 = vpack.c.bf16 %v1454, %v1453
    %v1492 = vpack.c.bf16 %v1456, %v1455
    %v1493 = vpack.c.bf16 %v1458, %v1457
    %v1494 = vpack.c.bf16 %v1460, %v1459
    %v1495 = vpack.c.bf16 %v1462, %v1461
    %v1496 = vpack.c.bf16 %v1464, %v1463
    %v1497 = vld [vmem:[%s5] sm:$0xf]
    %v1498 = vld [vmem:[%s5 + $0x4] sm:$0xf]
    %v1499 = vld [vmem:[%s5 + $0x8] sm:$0xf]
    %v1500 = vld [vmem:[%s5 + $0xc] sm:$0xf]
    %v1501 = vld [vmem:[%s5 + $0x10] sm:$0xf]
    %v1502 = vld [vmem:[%s5 + $0x14] sm:$0xf]
    %v1503 = vld [vmem:[%s5 + $0x18] sm:$0xf]
    %v1504 = vld [vmem:[%s5 + $0x1c] sm:$0xf]
    %v1505 = vld [vmem:[%s5 + $0x20] sm:$0xf]
    %v1506 = vld [vmem:[%s5 + $0x24] sm:$0xf]
    %v1507 = vld [vmem:[%s5 + $0x28] sm:$0xf]
    %v1508 = vld [vmem:[%s5 + $0x2c] sm:$0xf]
    %v1509 = vld [vmem:[%s5 + $0x30] sm:$0xf]
    %v1510 = vld [vmem:[%s5 + $0x34] sm:$0xf]
    %v1511 = vld [vmem:[%s5 + $0x38] sm:$0xf]
    %v1512 = vld [vmem:[%s5 + $0x3c] sm:$0xf]
    %v1513 = vld [vmem:[%s1 + $0x3] sm:$0x1]
    %v1514 = vlaneseq
    %v1515 = vshrl.u32 %v1514, 7
    %v1516 = vsub.s32 0, %v1515
    %v1517 = vrot.slane %v1513, %v1516
    %v1534 = vunpack.c.l.b16 %v1497
    %v1535 = vunpack.c.l.b16 %v1498
    %v1536 = vunpack.c.l.b16 %v1499
    %v1537 = vunpack.c.l.b16 %v1500
    %v1538 = vunpack.c.l.b16 %v1501
    %v1539 = vunpack.c.l.b16 %v1502
    %v1540 = vunpack.c.l.b16 %v1503
    %v1541 = vunpack.c.l.b16 %v1504
    %v1542 = vunpack.c.l.b16 %v1505
    %v1543 = vunpack.c.l.b16 %v1506
    %v1544 = vunpack.c.l.b16 %v1507
    %v1545 = vunpack.c.l.b16 %v1508
    %v1546 = vunpack.c.l.b16 %v1509
    %v1547 = vunpack.c.l.b16 %v1510
    %v1548 = vunpack.c.l.b16 %v1511
    %v1549 = vunpack.c.l.b16 %v1512
    %v1550 = vpack.c.b16 %v1535, %v1534
    %v1551 = vpack.c.b16 %v1537, %v1536
    %v1552 = vpack.c.b16 %v1539, %v1538
    %v1553 = vpack.c.b16 %v1541, %v1540
    %v1554 = vpack.c.b16 %v1543, %v1542
    %v1555 = vpack.c.b16 %v1545, %v1544
    %v1556 = vpack.c.b16 %v1547, %v1546
    %v1557 = vpack.c.b16 %v1549, %v1548
    %1566 = vmatprep.subr.bf16.mxu0 0
    %1567 = vmatpush1.bf16.msra.mxu0 %v1550
    %1568 = vmatprep.subr.bf16.mxu0 0
    %1569 = vmatpush1.bf16.msra.mxu0 %v1551
    %1570 = vmatprep.subr.bf16.mxu0 0
    %1571 = vmatpush1.bf16.msra.mxu0 %v1552
    %1572 = vmatprep.subr.bf16.mxu0 0
    %1573 = vmatpush1.bf16.msra.mxu0 %v1553
    %1574 = vmatprep.subr.bf16.mxu0 0
    %1575 = vmatpush1.bf16.msra.mxu0 %v1554
    %1576 = vmatprep.subr.bf16.mxu0 0
    %1577 = vmatpush1.bf16.msra.mxu0 %v1555
    %1578 = vmatprep.subr.bf16.mxu0 0
    %1579 = vmatpush1.bf16.msra.mxu0 %v1556
    %1580 = vmatprep.subr.bf16.mxu0 0
    %1581 = vmatpush1.bf16.msra.mxu0 %v1557
    %1582 = vmatprep.subr.bf16.mxu0 0
    %1583 = vmatpush1.bf16.msra.mxu0 0
    %1584 = vmatprep.subr.bf16.mxu0 0
    %1585 = vmatpush1.bf16.msra.mxu0 0
    %1586 = vmatprep.subr.bf16.mxu0 0
    %1587 = vmatpush1.bf16.msra.mxu0 0
    %1588 = vmatprep.subr.bf16.mxu0 0
    %1589 = vmatpush1.bf16.msra.mxu0 0
    %1590 = vmatprep.subr.bf16.mxu0 0
    %1591 = vmatpush1.bf16.msra.mxu0 0
    %1592 = vmatprep.subr.bf16.mxu0 0
    %1593 = vmatpush1.bf16.msra.mxu0 0
    %1594 = vmatprep.subr.bf16.mxu0 0
    %1595 = vmatpush1.bf16.msra.mxu0 0
    %1596 = vmatprep.subr.bf16.mxu0 0
    %1597 = vmatpush1.bf16.msra.mxu0 0
    %1598 = vmatprep.mubr.bf16.mxu0 0
    %1599 = vmatmul.mubr.bf16.gmra.mrb[0].mxu0 %v1465
    %v1600 = vpop.f32.mrb[0].mxu0
    %v1601 = vadd.f32 %v1517, %v1600
    %v1602 = vpop.f32.mrb[0].mxu0
    %v1603 = vpop.f32.mrb[0].mxu0
    %v1604 = vadd.f32 %v1517, %v1603
    %v1605 = vpop.f32.mrb[0].mxu0
    %1606 = vmatprep.mubr.bf16.mxu0 0
    %1607 = vmatmul.mubr.bf16.gmra.mrb[0].mxu0 %v1466
    %v1608 = vpop.f32.mrb[0].mxu0
    %v1609 = vadd.f32 %v1517, %v1608
    %v1610 = vpop.f32.mrb[0].mxu0
    %v1611 = vpop.f32.mrb[0].mxu0
    %v1612 = vadd.f32 %v1517, %v1611
    %v1613 = vpop.f32.mrb[0].mxu0
    %1614 = vmatprep.mubr.bf16.mxu0 0
    %1615 = vmatmul.mubr.bf16.gmra.mrb[0].mxu0 %v1467
    %v1616 = vpop.f32.mrb[0].mxu0
    %v1617 = vadd.f32 %v1517, %v1616
    %v1618 = vpop.f32.mrb[0].mxu0
    %v1619 = vpop.f32.mrb[0].mxu0
    %v1620 = vadd.f32 %v1517, %v1619
    %v1621 = vpop.f32.mrb[0].mxu0
    %1622 = vmatprep.mubr.bf16.mxu0 0
    %1623 = vmatmul.mubr.bf16.gmra.mrb[0].mxu0 %v1468
    %v1624 = vpop.f32.mrb[0].mxu0
    %v1625 = vadd.f32 %v1517, %v1624
    %v1626 = vpop.f32.mrb[0].mxu0
    %v1627 = vpop.f32.mrb[0].mxu0
    %v1628 = vadd.f32 %v1517, %v1627
    %v1629 = vpop.f32.mrb[0].mxu0
    %1630 = vmatprep.mubr.bf16.mxu0 0
    %1631 = vmatmul.mubr.bf16.gmra.mrb[0].mxu0 %v1469
    %v1632 = vpop.f32.mrb[0].mxu0
    %v1633 = vadd.f32 %v1517, %v1632
    %v1634 = vpop.f32.mrb[0].mxu0
    %v1635 = vpop.f32.mrb[0].mxu0
    %v1636 = vadd.f32 %v1517, %v1635
    %v1637 = vpop.f32.mrb[0].mxu0
    %1638 = vmatprep.mubr.bf16.mxu0 0
    %1639 = vmatmul.mubr.bf16.gmra.mrb[0].mxu0 %v1470
    %v1640 = vpop.f32.mrb[0].mxu0
    %v1641 = vadd.f32 %v1517, %v1640
    %v1642 = vpop.f32.mrb[0].mxu0
    %v1643 = vpop.f32.mrb[0].mxu0
    %v1644 = vadd.f32 %v1517, %v1643
    %v1645 = vpop.f32.mrb[0].mxu0
    %1646 = vmatprep.mubr.bf16.mxu0 0
    %1647 = vmatmul.mubr.bf16.gmra.mrb[0].mxu0 %v1471
    %v1648 = vpop.f32.mrb[0].mxu0
    %v1649 = vadd.f32 %v1517, %v1648
    %v1650 = vpop.f32.mrb[0].mxu0
    %v1651 = vpop.f32.mrb[0].mxu0
    %v1652 = vadd.f32 %v1517, %v1651
    %v1653 = vpop.f32.mrb[0].mxu0
    %1654 = vmatprep.mubr.bf16.mxu0 0
    %1655 = vmatmul.mubr.bf16.gmra.mrb[0].mxu0 %v1472
    %v1656 = vpop.f32.mrb[0].mxu0
    %v1657 = vadd.f32 %v1517, %v1656
    %v1658 = vpop.f32.mrb[0].mxu0
    %v1659 = vpop.f32.mrb[0].mxu0
    %v1660 = vadd.f32 %v1517, %v1659
    %v1661 = vpop.f32.mrb[0].mxu0
    %1662 = vmatprep.mubr.bf16.mxu0 0
    %1663 = vmatmul.mubr.bf16.gmra.mrb[0].mxu0 %v1473
    %v1664 = vpop.f32.mrb[0].mxu0
    %v1665 = vadd.f32 %v1517, %v1664
    %v1666 = vpop.f32.mrb[0].mxu0
    %v1667 = vpop.f32.mrb[0].mxu0
    %v1668 = vadd.f32 %v1517, %v1667
    %v1669 = vpop.f32.mrb[0].mxu0
    %1670 = vmatprep.mubr.bf16.mxu0 0
    %1671 = vmatmul.mubr.bf16.gmra.mrb[0].mxu0 %v1474
    %v1672 = vpop.f32.mrb[0].mxu0
    %v1673 = vadd.f32 %v1517, %v1672
    %v1674 = vpop.f32.mrb[0].mxu0
    %v1675 = vpop.f32.mrb[0].mxu0
    %v1676 = vadd.f32 %v1517, %v1675
    %v1677 = vpop.f32.mrb[0].mxu0
    %1678 = vmatprep.mubr.bf16.mxu0 0
    %1679 = vmatmul.mubr.bf16.gmra.mrb[0].mxu0 %v1475
    %v1680 = vpop.f32.mrb[0].mxu0
    %v1681 = vadd.f32 %v1517, %v1680
    %v1682 = vpop.f32.mrb[0].mxu0
    %v1683 = vpop.f32.mrb[0].mxu0
    %v1684 = vadd.f32 %v1517, %v1683
    %v1685 = vpop.f32.mrb[0].mxu0
    %1686 = vmatprep.mubr.bf16.mxu0 0
    %1687 = vmatmul.mubr.bf16.gmra.mrb[0].mxu0 %v1476
    %v1688 = vpop.f32.mrb[0].mxu0
    %v1689 = vadd.f32 %v1517, %v1688
    %v1690 = vpop.f32.mrb[0].mxu0
    %v1691 = vpop.f32.mrb[0].mxu0
    %v1692 = vadd.f32 %v1517, %v1691
    %v1693 = vpop.f32.mrb[0].mxu0
    %1694 = vmatprep.mubr.bf16.mxu0 0
    %1695 = vmatmul.mubr.bf16.gmra.mrb[0].mxu0 %v1477
    %v1696 = vpop.f32.mrb[0].mxu0
    %v1697 = vadd.f32 %v1517, %v1696
    %v1698 = vpop.f32.mrb[0].mxu0
    %v1699 = vpop.f32.mrb[0].mxu0
    %v1700 = vadd.f32 %v1517, %v1699
    %v1701 = vpop.f32.mrb[0].mxu0
    %1702 = vmatprep.mubr.bf16.mxu0 0
    %1703 = vmatmul.mubr.bf16.gmra.mrb[0].mxu0 %v1478
    %v1704 = vpop.f32.mrb[0].mxu0
    %v1705 = vadd.f32 %v1517, %v1704
    %v1706 = vpop.f32.mrb[0].mxu0
    %v1707 = vpop.f32.mrb[0].mxu0
    %v1708 = vadd.f32 %v1517, %v1707
    %v1709 = vpop.f32.mrb[0].mxu0
    %1710 = vmatprep.mubr.bf16.mxu0 0
    %1711 = vmatmul.mubr.bf16.gmra.mrb[0].mxu0 %v1479
    %v1712 = vpop.f32.mrb[0].mxu0
    %v1713 = vadd.f32 %v1517, %v1712
    %v1714 = vpop.f32.mrb[0].mxu0
    %v1715 = vpop.f32.mrb[0].mxu0
    %v1716 = vadd.f32 %v1517, %v1715
    %v1717 = vpop.f32.mrb[0].mxu0
    %1718 = vmatprep.mubr.bf16.mxu0 0
    %1719 = vmatmul.mubr.bf16.gmra.mrb[0].mxu0 %v1480
    %v1720 = vpop.f32.mrb[0].mxu0
    %v1721 = vadd.f32 %v1517, %v1720
    %v1722 = vpop.f32.mrb[0].mxu0
    %v1723 = vpop.f32.mrb[0].mxu0
    %v1724 = vadd.f32 %v1517, %v1723
    %v1725 = vpop.f32.mrb[0].mxu0
    %1726 = vmatprep.mubr.bf16.mxu0 0
    %1727 = vmatmul.mubr.bf16.gmra.mrb[0].mxu0 %v1481
    %v1728 = vpop.f32.mrb[0].mxu0
    %v1729 = vadd.f32 %v1517, %v1728
    %v1730 = vpop.f32.mrb[0].mxu0
    %v1731 = vpop.f32.mrb[0].mxu0
    %v1732 = vadd.f32 %v1517, %v1731
    %v1733 = vpop.f32.mrb[0].mxu0
    %1734 = vmatprep.mubr.bf16.mxu0 0
    %1735 = vmatmul.mubr.bf16.gmra.mrb[0].mxu0 %v1482
    %v1736 = vpop.f32.mrb[0].mxu0
    %v1737 = vadd.f32 %v1517, %v1736
    %v1738 = vpop.f32.mrb[0].mxu0
    %v1739 = vpop.f32.mrb[0].mxu0
    %v1740 = vadd.f32 %v1517, %v1739
    %v1741 = vpop.f32.mrb[0].mxu0
    %1742 = vmatprep.mubr.bf16.mxu0 0
    %1743 = vmatmul.mubr.bf16.gmra.mrb[0].mxu0 %v1483
    %v1744 = vpop.f32.mrb[0].mxu0
    %v1745 = vadd.f32 %v1517, %v1744
    %v1746 = vpop.f32.mrb[0].mxu0
    %v1747 = vpop.f32.mrb[0].mxu0
    %v1748 = vadd.f32 %v1517, %v1747
    %v1749 = vpop.f32.mrb[0].mxu0
    %1750 = vmatprep.mubr.bf16.mxu0 0
    %1751 = vmatmul.mubr.bf16.gmra.mrb[0].mxu0 %v1484
    %v1752 = vpop.f32.mrb[0].mxu0
    %v1753 = vadd.f32 %v1517, %v1752
    %v1754 = vpop.f32.mrb[0].mxu0
    %v1755 = vpop.f32.mrb[0].mxu0
    %v1756 = vadd.f32 %v1517, %v1755
    %v1757 = vpop.f32.mrb[0].mxu0
    %1758 = vmatprep.mubr.bf16.mxu0 0
    %1759 = vmatmul.mubr.bf16.gmra.mrb[0].mxu0 %v1485
    %v1760 = vpop.f32.mrb[0].mxu0
    %v1761 = vadd.f32 %v1517, %v1760
    %v1762 = vpop.f32.mrb[0].mxu0
    %v1763 = vpop.f32.mrb[0].mxu0
    %v1764 = vadd.f32 %v1517, %v1763
    %v1765 = vpop.f32.mrb[0].mxu0
    %1766 = vmatprep.mubr.bf16.mxu0 0
    %1767 = vmatmul.mubr.bf16.gmra.mrb[0].mxu0 %v1486
    %v1768 = vpop.f32.mrb[0].mxu0
    %v1769 = vadd.f32 %v1517, %v1768
    %v1770 = vpop.f32.mrb[0].mxu0
    %v1771 = vpop.f32.mrb[0].mxu0
    %v1772 = vadd.f32 %v1517, %v1771
    %v1773 = vpop.f32.mrb[0].mxu0
    %1774 = vmatprep.mubr.bf16.mxu0 0
    %1775 = vmatmul.mubr.bf16.gmra.mrb[0].mxu0 %v1487
    %v1776 = vpop.f32.mrb[0].mxu0
    %v1777 = vadd.f32 %v1517, %v1776
    %v1778 = vpop.f32.mrb[0].mxu0
    %v1779 = vpop.f32.mrb[0].mxu0
    %v1780 = vadd.f32 %v1517, %v1779
    %v1781 = vpop.f32.mrb[0].mxu0
    %1782 = vmatprep.mubr.bf16.mxu0 0
    %1783 = vmatmul.mubr.bf16.gmra.mrb[0].mxu0 %v1488
    %v1784 = vpop.f32.mrb[0].mxu0
    %v1785 = vadd.f32 %v1517, %v1784
    %v1786 = vpop.f32.mrb[0].mxu0
    %v1787 = vpop.f32.mrb[0].mxu0
    %v1788 = vadd.f32 %v1517, %v1787
    %v1789 = vpop.f32.mrb[0].mxu0
    %1790 = vmatprep.mubr.bf16.mxu0 0
    %1791 = vmatmul.mubr.bf16.gmra.mrb[0].mxu0 %v1489
    %v1792 = vpop.f32.mrb[0].mxu0
    %v1793 = vadd.f32 %v1517, %v1792
    %v1794 = vpop.f32.mrb[0].mxu0
    %v1795 = vpop.f32.mrb[0].mxu0
    %v1796 = vadd.f32 %v1517, %v1795
    %v1797 = vpop.f32.mrb[0].mxu0
    %1798 = vmatprep.mubr.bf16.mxu0 0
    %1799 = vmatmul.mubr.bf16.gmra.mrb[0].mxu0 %v1490
    %v1800 = vpop.f32.mrb[0].mxu0
    %v1801 = vadd.f32 %v1517, %v1800
    %v1802 = vpop.f32.mrb[0].mxu0
    %v1803 = vpop.f32.mrb[0].mxu0
    %v1804 = vadd.f32 %v1517, %v1803
    %v1805 = vpop.f32.mrb[0].mxu0
    %1806 = vmatprep.mubr.bf16.mxu0 0
    %1807 = vmatmul.mubr.bf16.gmra.mrb[0].mxu0 %v1491
    %v1808 = vpop.f32.mrb[0].mxu0
    %v1809 = vadd.f32 %v1517, %v1808
    %v1810 = vpop.f32.mrb[0].mxu0
    %v1811 = vpop.f32.mrb[0].mxu0
    %v1812 = vadd.f32 %v1517, %v1811
    %v1813 = vpop.f32.mrb[0].mxu0
    %1814 = vmatprep.mubr.bf16.mxu0 0
    %1815 = vmatmul.mubr.bf16.gmra.mrb[0].mxu0 %v1492
    %v1816 = vpop.f32.mrb[0].mxu0
    %v1817 = vadd.f32 %v1517, %v1816
    %v1818 = vpop.f32.mrb[0].mxu0
    %v1819 = vpop.f32.mrb[0].mxu0
    %v1820 = vadd.f32 %v1517, %v1819
    %v1821 = vpop.f32.mrb[0].mxu0
    %1822 = vmatprep.mubr.bf16.mxu0 0
    %1823 = vmatmul.mubr.bf16.gmra.mrb[0].mxu0 %v1493
    %v1824 = vpop.f32.mrb[0].mxu0
    %v1825 = vadd.f32 %v1517, %v1824
    %v1826 = vpop.f32.mrb[0].mxu0
    %v1827 = vpop.f32.mrb[0].mxu0
    %v1828 = vadd.f32 %v1517, %v1827
    %v1829 = vpop.f32.mrb[0].mxu0
    %1830 = vmatprep.mubr.bf16.mxu0 0
    %1831 = vmatmul.mubr.bf16.gmra.mrb[0].mxu0 %v1494
    %v1832 = vpop.f32.mrb[0].mxu0
    %v1833 = vadd.f32 %v1517, %v1832
    %v1834 = vpop.f32.mrb[0].mxu0
    %v1835 = vpop.f32.mrb[0].mxu0
    %v1836 = vadd.f32 %v1517, %v1835
    %v1837 = vpop.f32.mrb[0].mxu0
    %1838 = vmatprep.mubr.bf16.mxu0 0
    %1839 = vmatmul.mubr.bf16.gmra.mrb[0].mxu0 %v1495
    %v1840 = vpop.f32.mrb[0].mxu0
    %v1841 = vadd.f32 %v1517, %v1840
    %v1842 = vpop.f32.mrb[0].mxu0
    %v1843 = vpop.f32.mrb[0].mxu0
    %v1844 = vadd.f32 %v1517, %v1843
    %v1845 = vpop.f32.mrb[0].mxu0
    %1846 = vmatprep.mubr.bf16.mxu0 0
    %1847 = vmatmul.mubr.bf16.gmra.mrb[0].mxu0 %v1496
    %v1848 = vpop.f32.mrb[0].mxu0
    %v1849 = vadd.f32 %v1517, %v1848
    %v1850 = vpop.f32.mrb[0].mxu0
    %v1851 = vpop.f32.mrb[0].mxu0
    %v1852 = vadd.f32 %v1517, %v1851
    %v1853 = vpop.f32.mrb[0].mxu0
    %1854 = vdwg.mxu0
    %1855 = vst [vmem:[#allocation5] sm:$0xff] %v1601
    %1856 = vst [vmem:[#allocation5 + $0x8] sm:$0xff] %v1604
    %1857 = vst [vmem:[#allocation5 + $0x10] sm:$0xff] %v1609
    %1858 = vst [vmem:[#allocation5 + $0x18] sm:$0xff] %v1612
    %1859 = vst [vmem:[#allocation5 + $0x20] sm:$0xff] %v1617
    %1860 = vst [vmem:[#allocation5 + $0x28] sm:$0xff] %v1620
    %1861 = vst [vmem:[#allocation5 + $0x30] sm:$0xff] %v1625
    %1862 = vst [vmem:[#allocation5 + $0x38] sm:$0xff] %v1628
    %1863 = vst [vmem:[#allocation5 + $0x40] sm:$0xff] %v1633
    %1864 = vst [vmem:[#allocation5 + $0x48] sm:$0xff] %v1636
    %1865 = vst [vmem:[#allocation5 + $0x50] sm:$0xff] %v1641
    %1866 = vst [vmem:[#allocation5 + $0x58] sm:$0xff] %v1644
    %1867 = vst [vmem:[#allocation5 + $0x60] sm:$0xff] %v1649
    %1868 = vst [vmem:[#allocation5 + $0x68] sm:$0xff] %v1652
    %1869 = vst [vmem:[#allocation5 + $0x70] sm:$0xff] %v1657
    %1870 = vst [vmem:[#allocation5 + $0x78] sm:$0xff] %v1660
    %1871 = vst [vmem:[#allocation5 + $0x80] sm:$0xff] %v1665
    %1872 = vst [vmem:[#allocation5 + $0x88] sm:$0xff] %v1668
    %1873 = vst [vmem:[#allocation5 + $0x90] sm:$0xff] %v1673
    %1874 = vst [vmem:[#allocation5 + $0x98] sm:$0xff] %v1676
    %1875 = vst [vmem:[#allocation5 + $0xa0] sm:$0xff] %v1681
    %1876 = vst [vmem:[#allocation5 + $0xa8] sm:$0xff] %v1684
    %1877 = vst [vmem:[#allocation5 + $0xb0] sm:$0xff] %v1689
    %1878 = vst [vmem:[#allocation5 + $0xb8] sm:$0xff] %v1692
    %1879 = vst [vmem:[#allocation5 + $0xc0] sm:$0xff] %v1697
    %1880 = vst [vmem:[#allocation5 + $0xc8] sm:$0xff] %v1700
    %1881 = vst [vmem:[#allocation5 + $0xd0] sm:$0xff] %v1705
    %1882 = vst [vmem:[#allocation5 + $0xd8] sm:$0xff] %v1708
    %1883 = vst [vmem:[#allocation5 + $0xe0] sm:$0xff] %v1713
    %1884 = vst [vmem:[#allocation5 + $0xe8] sm:$0xff] %v1716
    %1885 = vst [vmem:[#allocation5 + $0xf0] sm:$0xff] %v1721
    %1886 = vst [vmem:[#allocation5 + $0xf8] sm:$0xff] %v1724
    %1887 = vst [vmem:[#allocation5 + $0x100] sm:$0xff] %v1729
    %1888 = vst [vmem:[#allocation5 + $0x108] sm:$0xff] %v1732
    %1889 = vst [vmem:[#allocation5 + $0x110] sm:$0xff] %v1737
    %1890 = vst [vmem:[#allocation5 + $0x118] sm:$0xff] %v1740
    %1891 = vst [vmem:[#allocation5 + $0x120] sm:$0xff] %v1745
    %1892 = vst [vmem:[#allocation5 + $0x128] sm:$0xff] %v1748
    %1893 = vst [vmem:[#allocation5 + $0x130] sm:$0xff] %v1753
    %1894 = vst [vmem:[#allocation5 + $0x138] sm:$0xff] %v1756
    %1895 = vst [vmem:[#allocation5 + $0x140] sm:$0xff] %v1761
    %1896 = vst [vmem:[#allocation5 + $0x148] sm:$0xff] %v1764
    %1897 = vst [vmem:[#allocation5 + $0x150] sm:$0xff] %v1769
    %1898 = vst [vmem:[#allocation5 + $0x158] sm:$0xff] %v1772
    %1899 = vst [vmem:[#allocation5 + $0x160] sm:$0xff] %v1777
    %1900 = vst [vmem:[#allocation5 + $0x168] sm:$0xff] %v1780
    %1901 = vst [vmem:[#allocation5 + $0x170] sm:$0xff] %v1785
    %1902 = vst [vmem:[#allocation5 + $0x178] sm:$0xff] %v1788
    %1903 = vst [vmem:[#allocation5 + $0x180] sm:$0xff] %v1793
    %1904 = vst [vmem:[#allocation5 + $0x188] sm:$0xff] %v1796
    %1905 = vst [vmem:[#allocation5 + $0x190] sm:$0xff] %v1801
    %1906 = vst [vmem:[#allocation5 + $0x198] sm:$0xff] %v1804
    %1907 = vst [vmem:[#allocation5 + $0x1a0] sm:$0xff] %v1809
    %1908 = vst [vmem:[#allocation5 + $0x1a8] sm:$0xff] %v1812
    %1909 = vst [vmem:[#allocation5 + $0x1b0] sm:$0xff] %v1817
    %1910 = vst [vmem:[#allocation5 + $0x1b8] sm:$0xff] %v1820
    %1911 = vst [vmem:[#allocation5 + $0x1c0] sm:$0xff] %v1825
    %1912 = vst [vmem:[#allocation5 + $0x1c8] sm:$0xff] %v1828
    %1913 = vst [vmem:[#allocation5 + $0x1d0] sm:$0xff] %v1833
    %1914 = vst [vmem:[#allocation5 + $0x1d8] sm:$0xff] %v1836
    %1915 = vst [vmem:[#allocation5 + $0x1e0] sm:$0xff] %v1841
    %1916 = vst [vmem:[#allocation5 + $0x1e8] sm:$0xff] %v1844
    %1917 = vst [vmem:[#allocation5 + $0x1f0] sm:$0xff] %v1849
    %1918 = vst [vmem:[#allocation5 + $0x1f8] sm:$0xff] %v1852
    // Predicated region
    $region30: #{tpu_custom_call.1} parent=1 // pred_check
      _
    $region31: #{tpu_custom_call.1} parent=1 // pred_check_branch
      %1920 = sbr.rel (0) target = $region33
    $region32: #{tpu_custom_call.1} parent=1 // pred_region
      %s1922 = ssub.s32 8192, 8192
      %1923 = vsyncadd [#allocation4], %s1922
      %s1924 = sshll.u32 [#allocation5], 4
      %s1925 = int_to_ptr.vmem [resolvable:$true] %s1924
      %1930 = dma.vmem_to_hbm [thread:$0]  %s1925, 8192, %s6, [#allocation4], 128, 128, 8
    $region33: #{tpu_custom_call.1} parent=1 // pred_fallthru
      _
    // Predicated region
    $region34: #{tpu_custom_call.1} parent=1 // pred_check
      _
    $region35: #{tpu_custom_call.1} parent=1 // pred_check_branch
      %1932 = sbr.rel (0) target = $region37
    $region36: #{tpu_custom_call.1} parent=1 // pred_region
      %1933 = dma.done [#allocation4], 8192
    $region37: #{tpu_custom_call.1} parent=1 // pred_fallthru
      _
    %1934 = vsyncpa [#allocation3], 1
    %1935 = vsyncpa [#allocation4], 1

</llo_original>
